<compile_context>
chip_gen: v7x
topology: tpu7x:2x2x1
jax: 0.10.0
libtpu: 0.0.40
codegen_flags: <defaults>
</compile_context>

<pallas_src>
import functools

import jax
import jax.numpy as jnp
from jax.experimental import pallas as pl
from jax.experimental.pallas import tpu as pltpu

LANE = 128   # vreg lane width / minimum padded feature & node granularity


def _round_up(x, m):
    return ((x + m - 1) // m) * m


def _pad2d(x, rows, cols):
    return jnp.pad(x, ((0, rows - x.shape[0]), (0, cols - x.shape[1])))


# ----------------------------------------------------------------------------
# Fused kernel over grid (layer, row_block):
#   at row_block 0 of layer l:  XW_l = H_{l-1} @ W'_l     (H_{-1} = X)
#   per row block:              Z = A[rows] @ XW_l + shift'_l ; ReLU ; JK = max(JK, Z) ; H_l[rows] = Z
#   at the last layer:          out[rows] = log_softmax(relu(JK @ W1 + b1) @ W2 + b2)
# ----------------------------------------------------------------------------
def _make_fused_kernel(num_layers, tm):
    def kernel(a_ref, x_ref, ws_ref, shift_ref, w1_ref, b1_ref, w2_ref, b2_ref,
               o_ref, xw_ref, h_ref, jk_ref):
        l = pl.program_id(0)
        i = pl.program_id(1)
        rs = pl.multiple_of(i * tm, tm)

        # (1) Once per layer (first row block): XW = H_prev @ W'. The layer axis is the outer,
        #     sequential grid axis, so the full H scratch from layer l-1 is complete here.
        @pl.when(i == 0)
        def _():
            @pl.when(l == 0)
            def _():
                xw_ref[...] = jnp.dot(
                    x_ref[...], ws_ref[...],
                    preferred_element_type=jnp.float32).astype(jnp.bfloat16)

            @pl.when(l > 0)
            def _():
                xw_ref[...] = jnp.dot(
                    h_ref[...], ws_ref[...],
                    preferred_element_type=jnp.float32).astype(jnp.bfloat16)

        # (2) GCN row block: A[rows] @ XW, folded-BN shift, ReLU (dropout == identity in eval).
        z = jnp.dot(a_ref[...], xw_ref[...], preferred_element_type=jnp.float32)
        z = jnp.maximum(z + shift_ref[...], 0.0)

        # (3) JumpingKnowledge running max in f32.
        @pl.when(l == 0)
        def _():
            jk_ref[pl.ds(rs, tm), :] = z

        @pl.when(l > 0)
        def _():
            jk_ref[pl.ds(rs, tm), :] = jnp.maximum(jk_ref[pl.ds(rs, tm), :], z)

        # (4) Stash H_l (bf16) for the next layer's XW; not needed after the last layer.
        @pl.when(l < num_layers - 1)
        def _():
            h_ref[pl.ds(rs, tm), :] = z.astype(jnp.bfloat16)

        # (5) After the last layer: bf16 MLP head + log_softmax for this row block.
        #     Padded logit columns carry -1e30 via b2, so their exp(...) is exactly 0.
        @pl.when(l == num_layers - 1)
        def _():
            jkb = jk_ref[pl.ds(rs, tm), :].astype(jnp.bfloat16)
            h1 = jnp.dot(jkb, w1_ref[...],
                         preferred_element_type=jnp.float32) + b1_ref[...]
            h1 = jnp.maximum(h1, 0.0).astype(jnp.bfloat16)
            y = jnp.dot(h1, w2_ref[...],
                        preferred_element_type=jnp.float32) + b2_ref[...]
            m = jnp.max(y, axis=-1, keepdims=True)
            zc = y - m
            lse = jnp.log(jnp.sum(jnp.exp(zc), axis=-1, keepdims=True))
            o_ref[...] = zc - lse

    return kernel


@functools.partial(jax.jit, static_argnames=("out_c",))
def _forward_impl(a_hat, x, ws, shifts, w1, b1, w2, b2, *, out_c):
    n = x.shape[0]
    num_layers, _, fp = ws.shape

    np_ = _round_up(n, LANE)                    # node dim padded to 128 (bf16 tile-safe)
    tm = 256 if (np_ % 256 == 0) else LANE      # 256-wide M tiles when possible (v6e/v7x MXU)
    nb = np_ // tm

    x_p = _pad2d(x, np_, fp).astype(jnp.bfloat16)
    a_p = _pad2d(a_hat, np_, np_).astype(jnp.bfloat16)

    flops = int(num_layers * (2 * np_ * fp * fp + 2 * np_ * np_ * fp)
                + 2 * (2 * np_ * fp * fp))
    transc = int(np_ * (fp + 1))
    bytes_accessed = int(
        num_layers * np_ * np_ * 2              # A_hat streamed once per layer
        + np_ * fp * 2                          # x
        + ws.size * 2 + shifts.size * 4
        + (w1.size + w2.size) * 2 + (b1.size + b2.size) * 4
        + num_layers * np_ * fp * 4)            # output block writebacks

    vmem_bytes = (
        2 * tm * np_ * 2                        # A row-block double buffer (bf16)
        + 2 * np_ * fp * 2                      # x (resident, double-buffered)
        + 2 * fp * fp * 2                       # W'_l stream buffer
        + 2 * fp * 4                            # shift'_l
        + 2 * (fp * fp * 2) * 2                 # w1, w2 (bf16)
        + 2 * (fp * 4) * 2                      # b1, b2
        + 2 * tm * fp * 4                       # output block double buffer
        + np_ * fp * (2 + 2 + 4))               # XW / H / JK scratch
    vmem_limit = int(min(max(vmem_bytes * 3 // 2, 32 * 1024 * 1024),
                         64 * 1024 * 1024))

    grid_spec = pltpu.PrefetchScalarGridSpec(
        num_scalar_prefetch=0,
        grid=(num_layers, nb),
        in_specs=[
            pl.BlockSpec((tm, np_), lambda l, i: (i, 0)),          # A_hat row block (streamed)
            pl.BlockSpec((np_, fp), lambda l, i: (0, 0)),          # X (VMEM resident)
            pl.BlockSpec((None, fp, fp), lambda l, i: (l, 0, 0)),  # W'_l  (bf16, per layer)
            pl.BlockSpec((None, 1, fp), lambda l, i: (l, 0, 0)),   # shift'_l
            pl.BlockSpec((fp, fp), lambda l, i: (0, 0)),           # W1 (bf16)
            pl.BlockSpec((1, fp), lambda l, i: (0, 0)),            # b1
            pl.BlockSpec((fp, fp), lambda l, i: (0, 0)),           # W2 (bf16)
            pl.BlockSpec((1, fp), lambda l, i: (0, 0)),            # b2 (padded cols = -1e30)
        ],
        out_specs=pl.BlockSpec((tm, fp), lambda l, i: (i, 0)),
        scratch_shapes=[
            pltpu.VMEM((np_, fp), jnp.bfloat16),   # XW_l
            pltpu.VMEM((np_, fp), jnp.bfloat16),   # H_l
            pltpu.VMEM((np_, fp), jnp.float32),    # JK running max
        ],
    )

    out_p = pl.pallas_call(
        _make_fused_kernel(num_layers, tm),
        out_shape=jax.ShapeDtypeStruct((np_, fp), jnp.float32),
        grid_spec=grid_spec,
        compiler_params=pltpu.CompilerParams(
            dimension_semantics=("arbitrary", "arbitrary"),
            vmem_limit_bytes=vmem_limit),
        cost_estimate=pl.CostEstimate(flops=flops,
                                      transcendentals=transc,
                                      bytes_accessed=bytes_accessed),
    )(a_p, x_p, ws, shifts, w1, b1, w2, b2)
    return out_p[:n, :out_c]


def jknet_forward(folded, x, a_hat):
    return _forward_impl(a_hat, x, folded["ws"], folded["shifts"],
                         folded["w1"], folded["b1"], folded["w2"], folded["b2"],
                         out_c=folded["out_c"])


# ----------------------------------------------------------------------------
# Host-side glue: adjacency normalization, parameter construction, fold + pad
# ----------------------------------------------------------------------------
def gcn_normalize(adj):
    """A_hat = D^-1/2 (A + I) D^-1/2 for a dense 0/1 adjacency."""
    n = adj.shape[0]
    a = adj + jnp.eye(n, dtype=adj.dtype)
    deg = jnp.sum(a, axis=1)
    d_inv_sqrt = jnp.where(deg > 0, 1.0 / jnp.sqrt(deg), 0.0)
    return a * d_inv_sqrt[:, None] * d_inv_sqrt[None, :]


def make_params(key, in_channels, hidden_channels, out_channels, num_layers):
    params = {"convs": [], "bns": []}
    dims = [in_channels] + [hidden_channels] * num_layers
    for i in range(num_layers):
        key, kw = jax.random.split(key)
        fan_in, fan_out = dims[i], dims[i + 1]
        limit = jnp.sqrt(6.0 / (fan_in + fan_out))           # glorot (GCNConv default)
        w = jax.random.uniform(kw, (fan_in, fan_out), jnp.float32, -limit, limit)
        b = jnp.zeros((1, fan_out), jnp.float32)
        params["convs"].append((w, b))
        # BatchNorm1d params (eval mode) -> scale/shift
        key, kg, kbt, km, kv = jax.random.split(key, 5)
        gamma = 1.0 + 0.1 * jax.random.normal(kg, (fan_out,), jnp.float32)
        beta = 0.1 * jax.random.normal(kbt, (fan_out,), jnp.float32)
        r_mean = 0.1 * jax.random.normal(km, (fan_out,), jnp.float32)
        r_var = jnp.abs(1.0 + 0.1 * jax.random.normal(kv, (fan_out,), jnp.float32))
        eps = 1e-5
        scale = gamma / jnp.sqrt(r_var + eps)
        shift = beta - r_mean * scale
        params["bns"].append((scale[None, :], shift[None, :]))

    def linear_init(key, fin, fout):
        k1, k2 = jax.random.split(key)
        limit = 1.0 / jnp.sqrt(fin)                           # torch.nn.Linear default
        w = jax.random.uniform(k1, (fin, fout), jnp.float32, -limit, limit)
        b = jax.random.uniform(k2, (1, fout), jnp.float32, -limit, limit)
        return w, b

    key, k1, k2 = jax.random.split(key, 3)
    params["lin1"] = linear_init(k1, hidden_channels, hidden_channels)
    params["lin2"] = linear_init(k2, hidden_channels, out_channels)
    return params


def fold_and_pad(params, in_channels, hidden_channels, out_channels):
    """Fold eval-mode BatchNorm scale into the conv weight (W' = W * scale) and conv bias +
    BN shift into shift' (= shift + b*scale); cast matmul operands to bf16; zero-pad every
    feature dim to the 128-lane width. Padded logit columns of b2 get -1e30."""
    fp = _round_up(max(in_channels, hidden_channels, out_channels), LANE)
    ws, shifts = [], []
    for (w, b), (scale, shift) in zip(params["convs"], params["bns"]):
        w_eff = w * scale                          # per-output-column scale commutes with A@(.)
        shift_eff = shift + b * scale              # bn(h + b) = h*scale + (b*scale + shift)
        ws.append(_pad2d(w_eff, fp, fp).astype(jnp.bfloat16))
        shifts.append(_pad2d(shift_eff, 1, fp))
    w1, b1 = params["lin1"]
    w2, b2 = params["lin2"]
    b2_pad = jnp.concatenate(
        [b2, jnp.full((1, fp - out_channels), -1e30, jnp.float32)], axis=1)
    return {
        "ws": jnp.stack(ws, axis=0),               # (L, Fp, Fp) bf16 (BN scale folded)
        "shifts": jnp.stack(shifts, axis=0),       # (L, 1, Fp) f32
        "w1": _pad2d(w1, fp, fp).astype(jnp.bfloat16),
        "b1": _pad2d(b1, 1, fp),
        "w2": _pad2d(w2, fp, fp).astype(jnp.bfloat16),
        "b2": b2_pad,
        "out_c": out_channels,
    }


def jknet_reference(params, x, a_hat):
    """Pure-JAX reference mirroring the kernel's precision choices
    (bf16 MXU inputs with f32 accumulation everywhere, BN scale folded into W)."""
    a = a_hat.astype(jnp.bfloat16)
    h = x.astype(jnp.bfloat16)
    xs = []
    for (w, b), (scale, shift) in zip(params["convs"], params["bns"]):
        w_eff = (w * scale).astype(jnp.bfloat16)
        xw = jnp.dot(h, w_eff, preferred_element_type=jnp.float32).astype(jnp.bfloat16)
        z = jnp.dot(a, xw, preferred_element_type=jnp.float32)
        z = jnp.maximum(z + (shift + b * scale), 0.0)
        xs.append(z)
        h = z.astype(jnp.bfloat16)
    hmax = jnp.max(jnp.stack(xs, axis=0), axis=0)
    w1, b1 = params["lin1"]
    w2, b2 = params["lin2"]
    h1 = jnp.dot(hmax.astype(jnp.bfloat16), w1.astype(jnp.bfloat16),
                 preferred_element_type=jnp.float32) + b1
    h1 = jnp.maximum(h1, 0.0).astype(jnp.bfloat16)
    y = jnp.dot(h1, w2.astype(jnp.bfloat16),
                preferred_element_type=jnp.float32) + b2
    return jax.nn.log_softmax(y, axis=-1)


# ----------------------------------------------------------------------------
if __name__ == "__main__":
    N = 64             # number of graph nodes
    IN_C = 16          # in_channels
    HID = 32           # hidden_channels
    OUT_C = 8          # out_channels
    L = 3              # num_layers

    key = jax.random.PRNGKey(0)
    key, kx, ka, kp = jax.random.split(key, 4)

    x = jax.random.normal(kx, (N, IN_C), jnp.float32)
    # deterministic random undirected graph
    adj_rand = jax.random.uniform(ka, (N, N))
    adj = (adj_rand < 0.1).astype(jnp.float32)
    adj = jnp.maximum(adj, adj.T)
    adj = adj * (1.0 - jnp.eye(N, dtype=jnp.float32))
    a_hat = gcn_normalize(adj)

    params = make_params(kp, IN_C, HID, OUT_C, L)
    folded = fold_and_pad(params, IN_C, HID, OUT_C)

    out = jknet_forward(folded, x, a_hat)
    out = jax.block_until_ready(out)

    ref = jknet_reference(params, x, a_hat)
    assert out.shape == (N, OUT_C)
    assert jnp.allclose(out, ref, atol=5e-3, rtol=5e-3), "mismatch vs reference"

    print("KERNEL_OK")
</pallas_src>

<mosaic_0001>
module attributes {stable_mosaic.version = 11 : i64} {
  func.func @kernel(%arg0: i32, %arg1: i32, %arg2: memref<128x128xbf16, #tpu.memory_space<vmem>>, %arg3: memref<128x128xbf16, #tpu.memory_space<vmem>>, %arg4: memref<1x128x128xbf16, #tpu.memory_space<vmem>>, %arg5: memref<1x1x128xf32, #tpu.memory_space<vmem>>, %arg6: memref<128x128xbf16, #tpu.memory_space<vmem>>, %arg7: memref<1x128xf32, #tpu.memory_space<vmem>>, %arg8: memref<128x128xbf16, #tpu.memory_space<vmem>>, %arg9: memref<1x128xf32, #tpu.memory_space<vmem>>, %arg10: memref<128x128xf32, #tpu.memory_space<vmem>>, %arg11: memref<128x128xbf16, #tpu.memory_space<vmem>>, %arg12: memref<128x128xbf16, #tpu.memory_space<vmem>>, %arg13: memref<128x128xf32, #tpu.memory_space<vmem>>) attributes {dimension_semantics = [#tpu.dimension_semantics<arbitrary>, #tpu.dimension_semantics<arbitrary>], iteration_bounds = array<i64: 3, 1>, scalar_prefetch = 0 : i64, scratch_operands = 3 : i64, tpu.core_type = #tpu.core_type<tc>, window_params = [{transform_indices = @transform_0, window_bounds = array<i64: 128, 128>}, {pipeline_mode = #tpu.pipeline_mode<synchronous>, transform_indices = @transform_1, window_bounds = array<i64: 128, 128>}, {transform_indices = @transform_2, window_bounds = array<i64: 1, 128, 128>}, {transform_indices = @transform_3, window_bounds = array<i64: 1, 1, 128>}, {pipeline_mode = #tpu.pipeline_mode<synchronous>, transform_indices = @transform_4, window_bounds = array<i64: 128, 128>}, {pipeline_mode = #tpu.pipeline_mode<synchronous>, transform_indices = @transform_5, window_bounds = array<i64: 1, 128>}, {pipeline_mode = #tpu.pipeline_mode<synchronous>, transform_indices = @transform_6, window_bounds = array<i64: 128, 128>}, {pipeline_mode = #tpu.pipeline_mode<synchronous>, transform_indices = @transform_7, window_bounds = array<i64: 1, 128>}, {transform_indices = @transform_8, window_bounds = array<i64: 128, 128>}]} {
    %c128_i32 = arith.constant 128 : i32
    %0 = arith.muli %arg1, %c128_i32 : i32
    %1 = tpu.assume_multiple %0, 128 : i32
    %c0_i32 = arith.constant 0 : i32
    %2 = arith.cmpi eq, %arg1, %c0_i32 : i32
    %3 = arith.extui %2 : i1 to i32
    %c0_i32_0 = arith.constant 0 : i32
    %4 = arith.cmpi ne, %3, %c0_i32_0 : i32
    scf.if %4 {
      %c0_i32_15 = arith.constant 0 : i32
      %26 = arith.cmpi eq, %arg0, %c0_i32_15 : i32
      %27 = arith.extui %26 : i1 to i32
      %c0_i32_16 = arith.constant 0 : i32
      %28 = arith.cmpi ne, %27, %c0_i32_16 : i32
      scf.if %28 {
        %c0_19 = arith.constant 0 : index
        %c0_20 = arith.constant 0 : index
        %32 = vector.load %arg3[%c0_19, %c0_20] : memref<128x128xbf16, #tpu.memory_space<vmem>>, vector<128x128xbf16>
        %c0_21 = arith.constant 0 : index
        %c0_22 = arith.constant 0 : index
        %c0_23 = arith.constant 0 : index
        %33 = vector.load %arg4[%c0_21, %c0_22, %c0_23] : memref<1x128x128xbf16, #tpu.memory_space<vmem>>, vector<1x128x128xbf16>
        %34 = vector.shape_cast %33 : vector<1x128x128xbf16> to vector<128x128xbf16>
        %cst_24 = arith.constant dense<0.000000e+00> : vector<128x128xf32>
        %35 = tpu.matmul %32, %34, %cst_24 {dimension_numbers = #tpu.dot_dimension_numbers<[1], [0], [0], [1], [0, 0, 1, 1], [], []>} : vector<128x128xbf16>, vector<128x128xbf16>, vector<128x128xf32> -> vector<128x128xf32>
        %36 = arith.truncf %35 : vector<128x128xf32> to vector<128x128xbf16>
        %c0_25 = arith.constant 0 : index
        %c0_26 = arith.constant 0 : index
        %37 = vector.load %arg11[%c0_25, %c0_26] : memref<128x128xbf16, #tpu.memory_space<vmem>>, vector<128x128xbf16>
        tpu.vector_store %arg11[%c0_25, %c0_26], %36 {strides = array<i32>} : memref<128x128xbf16, #tpu.memory_space<vmem>>, vector<128x128xbf16>,
      } else {
      }
      %c0_i32_17 = arith.constant 0 : i32
      %29 = arith.cmpi sgt, %arg0, %c0_i32_17 : i32
      %30 = arith.extui %29 : i1 to i32
      %c0_i32_18 = arith.constant 0 : i32
      %31 = arith.cmpi ne, %30, %c0_i32_18 : i32
      scf.if %31 {
        %c0_19 = arith.constant 0 : index
        %c0_20 = arith.constant 0 : index
        %32 = vector.load %arg12[%c0_19, %c0_20] : memref<128x128xbf16, #tpu.memory_space<vmem>>, vector<128x128xbf16>
        %c0_21 = arith.constant 0 : index
        %c0_22 = arith.constant 0 : index
        %c0_23 = arith.constant 0 : index
        %33 = vector.load %arg4[%c0_21, %c0_22, %c0_23] : memref<1x128x128xbf16, #tpu.memory_space<vmem>>, vector<1x128x128xbf16>
        %34 = vector.shape_cast %33 : vector<1x128x128xbf16> to vector<128x128xbf16>
        %cst_24 = arith.constant dense<0.000000e+00> : vector<128x128xf32>
        %35 = tpu.matmul %32, %34, %cst_24 {dimension_numbers = #tpu.dot_dimension_numbers<[1], [0], [0], [1], [0, 0, 1, 1], [], []>} : vector<128x128xbf16>, vector<128x128xbf16>, vector<128x128xf32> -> vector<128x128xf32>
        %36 = arith.truncf %35 : vector<128x128xf32> to vector<128x128xbf16>
        %c0_25 = arith.constant 0 : index
        %c0_26 = arith.constant 0 : index
        %37 = vector.load %arg11[%c0_25, %c0_26] : memref<128x128xbf16, #tpu.memory_space<vmem>>, vector<128x128xbf16>
        tpu.vector_store %arg11[%c0_25, %c0_26], %36 {strides = array<i32>} : memref<128x128xbf16, #tpu.memory_space<vmem>>, vector<128x128xbf16>,
      } else {
      }
    } else {
    }
    %c0 = arith.constant 0 : index
    %c0_1 = arith.constant 0 : index
    %5 = vector.load %arg2[%c0, %c0_1] : memref<128x128xbf16, #tpu.memory_space<vmem>>, vector<128x128xbf16>
    %c0_2 = arith.constant 0 : index
    %c0_3 = arith.constant 0 : index
    %6 = vector.load %arg11[%c0_2, %c0_3] : memref<128x128xbf16, #tpu.memory_space<vmem>>, vector<128x128xbf16>
    %cst = arith.constant dense<0.000000e+00> : vector<128x128xf32>
    %7 = tpu.matmul %5, %6, %cst {dimension_numbers = #tpu.dot_dimension_numbers<[1], [0], [0], [1], [0, 0, 1, 1], [], []>} : vector<128x128xbf16>, vector<128x128xbf16>, vector<128x128xf32> -> vector<128x128xf32>
    %c0_4 = arith.constant 0 : index
    %c0_5 = arith.constant 0 : index
    %c0_6 = arith.constant 0 : index
    %8 = vector.load %arg5[%c0_4, %c0_5, %c0_6] : memref<1x1x128xf32, #tpu.memory_space<vmem>>, vector<1x1x128xf32>
    %9 = vector.shape_cast %8 : vector<1x1x128xf32> to vector<1x128xf32>
    %10 = vector.broadcast %9 : vector<1x128xf32> to vector<128x128xf32>
    %11 = arith.addf %7, %10 : vector<128x128xf32>
    %cst_7 = arith.constant 0.000000e+00 : f32
    %12 = vector.broadcast %cst_7 : f32 to vector<128x128xf32>
    %13 = arith.maximumf %11, %12 : vector<128x128xf32>
    %c0_i32_8 = arith.constant 0 : i32
    %14 = arith.cmpi eq, %arg0, %c0_i32_8 : i32
    %15 = arith.extui %14 : i1 to i32
    %c0_i32_9 = arith.constant 0 : i32
    %16 = arith.cmpi ne, %15, %c0_i32_9 : i32
    scf.if %16 {
      %26 = arith.index_cast %1 : i32 to index
      %c0_15 = arith.constant 0 : index
      %27 = vector.load %arg13[%26, %c0_15] : memref<128x128xf32, #tpu.memory_space<vmem>>, vector<128x128xf32>
      tpu.vector_store %arg13[%26, %c0_15], %13 {strides = array<i32>} : memref<128x128xf32, #tpu.memory_space<vmem>>, vector<128x128xf32>,
    } else {
    }
    %c0_i32_10 = arith.constant 0 : i32
    %17 = arith.cmpi sgt, %arg0, %c0_i32_10 : i32
    %18 = arith.extui %17 : i1 to i32
    %c0_i32_11 = arith.constant 0 : i32
    %19 = arith.cmpi ne, %18, %c0_i32_11 : i32
    scf.if %19 {
      %26 = arith.index_cast %1 : i32 to index
      %c0_15 = arith.constant 0 : index
      %27 = vector.load %arg13[%26, %c0_15] : memref<128x128xf32, #tpu.memory_space<vmem>>, vector<128x128xf32>
      %28 = arith.maximumf %27, %13 : vector<128x128xf32>
      %29 = arith.index_cast %1 : i32 to index
      %c0_16 = arith.constant 0 : index
      %30 = vector.load %arg13[%29, %c0_16] : memref<128x128xf32, #tpu.memory_space<vmem>>, vector<128x128xf32>
      tpu.vector_store %arg13[%29, %c0_16], %28 {strides = array<i32>} : memref<128x128xf32, #tpu.memory_space<vmem>>, vector<128x128xf32>,
    } else {
    }
    %c2_i32 = arith.constant 2 : i32
    %20 = arith.cmpi slt, %arg0, %c2_i32 : i32
    %21 = arith.extui %20 : i1 to i32
    %c0_i32_12 = arith.constant 0 : i32
    %22 = arith.cmpi ne, %21, %c0_i32_12 : i32
    scf.if %22 {
      %26 = arith.truncf %13 : vector<128x128xf32> to vector<128x128xbf16>
      %27 = arith.index_cast %1 : i32 to index
      %c0_15 = arith.constant 0 : index
      %28 = vector.load %arg12[%27, %c0_15] : memref<128x128xbf16, #tpu.memory_space<vmem>>, vector<128x128xbf16>
      tpu.vector_store %arg12[%27, %c0_15], %26 {strides = array<i32>} : memref<128x128xbf16, #tpu.memory_space<vmem>>, vector<128x128xbf16>,
    } else {
    }
    %c2_i32_13 = arith.constant 2 : i32
    %23 = arith.cmpi eq, %arg0, %c2_i32_13 : i32
    %24 = arith.extui %23 : i1 to i32
    %c0_i32_14 = arith.constant 0 : i32
    %25 = arith.cmpi ne, %24, %c0_i32_14 : i32
    scf.if %25 {
      %26 = arith.index_cast %1 : i32 to index
      %c0_15 = arith.constant 0 : index
      %27 = vector.load %arg13[%26, %c0_15] : memref<128x128xf32, #tpu.memory_space<vmem>>, vector<128x128xf32>
      %28 = arith.truncf %27 : vector<128x128xf32> to vector<128x128xbf16>
      %c0_16 = arith.constant 0 : index
      %c0_17 = arith.constant 0 : index
      %29 = vector.load %arg6[%c0_16, %c0_17] : memref<128x128xbf16, #tpu.memory_space<vmem>>, vector<128x128xbf16>
      %cst_18 = arith.constant dense<0.000000e+00> : vector<128x128xf32>
      %30 = tpu.matmul %28, %29, %cst_18 {dimension_numbers = #tpu.dot_dimension_numbers<[1], [0], [0], [1], [0, 0, 1, 1], [], []>} : vector<128x128xbf16>, vector<128x128xbf16>, vector<128x128xf32> -> vector<128x128xf32>
      %c0_19 = arith.constant 0 : index
      %c0_20 = arith.constant 0 : index
      %31 = vector.load %arg7[%c0_19, %c0_20] : memref<1x128xf32, #tpu.memory_space<vmem>>, vector<1x128xf32>
      %32 = vector.broadcast %31 : vector<1x128xf32> to vector<128x128xf32>
      %33 = arith.addf %30, %32 : vector<128x128xf32>
      %cst_21 = arith.constant 0.000000e+00 : f32
      %34 = vector.broadcast %cst_21 : f32 to vector<128x128xf32>
      %35 = arith.maximumf %33, %34 : vector<128x128xf32>
      %36 = arith.truncf %35 : vector<128x128xf32> to vector<128x128xbf16>
      %c0_22 = arith.constant 0 : index
      %c0_23 = arith.constant 0 : index
      %37 = vector.load %arg8[%c0_22, %c0_23] : memref<128x128xbf16, #tpu.memory_space<vmem>>, vector<128x128xbf16>
      %cst_24 = arith.constant dense<0.000000e+00> : vector<128x128xf32>
      %38 = tpu.matmul %36, %37, %cst_24 {dimension_numbers = #tpu.dot_dimension_numbers<[1], [0], [0], [1], [0, 0, 1, 1], [], []>} : vector<128x128xbf16>, vector<128x128xbf16>, vector<128x128xf32> -> vector<128x128xf32>
      %c0_25 = arith.constant 0 : index
      %c0_26 = arith.constant 0 : index
      %39 = vector.load %arg9[%c0_25, %c0_26] : memref<1x128xf32, #tpu.memory_space<vmem>>, vector<1x128xf32>
      %40 = vector.broadcast %39 : vector<1x128xf32> to vector<128x128xf32>
      %41 = arith.addf %38, %40 : vector<128x128xf32>
      %cst_27 = arith.constant dense<0xFF800000> : vector<128xf32>
      %42 = vector.multi_reduction <maximumf>, %41, %cst_27 [1] : vector<128x128xf32> to vector<128xf32>
      %43 = vector.shape_cast %42 : vector<128xf32> to vector<128x1xf32>
      %44 = vector.broadcast %43 : vector<128x1xf32> to vector<128x128xf32>
      %45 = arith.subf %41, %44 : vector<128x128xf32>
      %46 = math.exp %45 : vector<128x128xf32>
      %cst_28 = arith.constant dense<0.000000e+00> : vector<128xf32>
      %47 = vector.multi_reduction <add>, %46, %cst_28 [1] : vector<128x128xf32> to vector<128xf32>
      %48 = vector.shape_cast %47 : vector<128xf32> to vector<128x1xf32>
      %49 = math.log %48 : vector<128x1xf32>
      %50 = vector.broadcast %49 : vector<128x1xf32> to vector<128x128xf32>
      %51 = arith.subf %45, %50 : vector<128x128xf32>
      %c0_29 = arith.constant 0 : index
      %c0_30 = arith.constant 0 : index
      %52 = vector.load %arg10[%c0_29, %c0_30] : memref<128x128xf32, #tpu.memory_space<vmem>>, vector<128x128xf32>
      tpu.vector_store %arg10[%c0_29, %c0_30], %51 {strides = array<i32>} : memref<128x128xf32, #tpu.memory_space<vmem>>, vector<128x128xf32>,
    } else {
    }
    return
  }
  func.func @transform_0(%arg0: i32, %arg1: i32) -> (i32, i32) {
    %c0_i32 = arith.constant 0 : i32
    %c0_i32_0 = arith.constant 0 : i32
    return %arg1, %c0_i32 : i32, i32
  }
  func.func @transform_1(%arg0: i32, %arg1: i32) -> (i32, i32) {
    %c0_i32 = arith.constant 0 : i32
    %c0_i32_0 = arith.constant 0 : i32
    %c0_i32_1 = arith.constant 0 : i32
    return %c0_i32, %c0_i32_0 : i32, i32
  }
  func.func @transform_2(%arg0: i32, %arg1: i32) -> (i32, i32, i32) {
    %c0_i32 = arith.constant 0 : i32
    %c0_i32_0 = arith.constant 0 : i32
    %c0_i32_1 = arith.constant 0 : i32
    return %arg0, %c0_i32, %c0_i32_0 : i32, i32, i32
  }
  func.func @transform_3(%arg0: i32, %arg1: i32) -> (i32, i32, i32) {
    %c0_i32 = arith.constant 0 : i32
    %c0_i32_0 = arith.constant 0 : i32
    %c0_i32_1 = arith.constant 0 : i32
    return %arg0, %c0_i32, %c0_i32_0 : i32, i32, i32
  }
  func.func @transform_4(%arg0: i32, %arg1: i32) -> (i32, i32) {
    %c0_i32 = arith.constant 0 : i32
    %c0_i32_0 = arith.constant 0 : i32
    %c0_i32_1 = arith.constant 0 : i32
    return %c0_i32, %c0_i32_0 : i32, i32
  }
  func.func @transform_5(%arg0: i32, %arg1: i32) -> (i32, i32) {
    %c0_i32 = arith.constant 0 : i32
    %c0_i32_0 = arith.constant 0 : i32
    %c0_i32_1 = arith.constant 0 : i32
    return %c0_i32, %c0_i32_0 : i32, i32
  }
  func.func @transform_6(%arg0: i32, %arg1: i32) -> (i32, i32) {
    %c0_i32 = arith.constant 0 : i32
    %c0_i32_0 = arith.constant 0 : i32
    %c0_i32_1 = arith.constant 0 : i32
    return %c0_i32, %c0_i32_0 : i32, i32
  }
  func.func @transform_7(%arg0: i32, %arg1: i32) -> (i32, i32) {
    %c0_i32 = arith.constant 0 : i32
    %c0_i32_0 = arith.constant 0 : i32
    %c0_i32_1 = arith.constant 0 : i32
    return %c0_i32, %c0_i32_0 : i32, i32
  }
  func.func @transform_8(%arg0: i32, %arg1: i32) -> (i32, i32) {
    %c0_i32 = arith.constant 0 : i32
    %c0_i32_0 = arith.constant 0 : i32
    return %arg1, %c0_i32 : i32, i32
  }
}

</mosaic_0001>

<llo_original>
// kernel: _forward_impl.1
$region0: #{_forward_impl.1}
  #allocation0 [shape = 'u32[]', space=smem, size = 0x4, offset = 0x4, fixed_abs, tag = 'smem constant byte address 0x4 - core index']
  #allocation1 [shape = 'u32[144,128]{1,0:T(1,128)}', space=vmem, size = 0x12000, scoped, tag = 'internal scratch']
  #allocation2 [shape = 'bf16[128,128]{1,0:T(16,128)(2,1)}', space=vmem, size = 0x8000, scoped, tag = 'scratch operand']
  #allocation3 [shape = 'bf16[128,128]{1,0:T(16,128)(2,1)}', space=vmem, size = 0x8000, scoped, tag = 'scratch operand']
  #allocation4 [shape = 'f32[128,128]{1,0:T(8,128)}', space=vmem, size = 0x10000, scoped, tag = 'scratch operand']
  %s0 = inlined_call_operand.vmem [shape: bf16[128,128], index: 0, kind: input, shape index: {}]
  %s1 = inlined_call_operand.vmem [shape: bf16[128,128], index: 1, kind: input, shape index: {}]
  %s2 = inlined_call_operand.vmem [shape: bf16[3,128,128], index: 2, kind: input, shape index: {}]
  %s3 = inlined_call_operand.vmem [shape: f32[3,1,128], index: 3, kind: input, shape index: {}]
  %s4 = inlined_call_operand.vmem [shape: bf16[128,128], index: 4, kind: input, shape index: {}]
  %s5 = inlined_call_operand.vmem [shape: f32[1,128], index: 5, kind: input, shape index: {}]
  %s6 = inlined_call_operand.vmem [shape: bf16[128,128], index: 6, kind: input, shape index: {}]
  %s7 = inlined_call_operand.vmem [shape: f32[1,128], index: 7, kind: input, shape index: {}]
  %s8 = inlined_call_operand.vmem [shape: f32[128,128], index: 8, kind: output, shape index: {}]
  %s9 = sld [smem:[#allocation0]]
  $region93: #{_forward_impl.1} parent=0
    _
  %s11 = ssub.s32 1, %s9
  %s12 = scalar_select 0, %s11, %s9
  loop: start=0, step=1, limit=5
  $region2: #{_forward_impl.1} parent=0 // loop_pre_header
    _
  $region3: #{_forward_impl.1} parent=0 // loop_header
    %s14 = sphi 0, %s18
    %p15 = scmp.ge.s32.totalorder %s14, 5
    %s21 = sphi 0, %s33
    %s22 = sphi 0, %s29
    %s23 = sphi 0, %s21
    %s24 = sphi 0, %s22
    %s25 = sphi 0, %s23
    %s26 = sphi 0, %s24
    %s36 = sphi 0, %s38
    %s39 = sphi 0, %s36
    %s40 = sphi 0, %s39
    %s56 = sphi 0, %s40
    %s60 = sphi 0, %s60
    %s62 = sphi 0, %s60
    %s63 = sphi 0, %s62
    %s77 = sphi 0, %s63
    %s83 = sphi 0, %s85
    %s86 = sphi 0, %s83
    %s87 = sphi 0, %s86
    %s103 = sphi 0, %s87
    %s109 = sphi 0, %s111
    %s112 = sphi 0, %s109
    %s113 = sphi 0, %s112
    %s129 = sphi 0, %s113
    %s133 = sphi 0, %s133
    %s135 = sphi 0, %s133
    %s136 = sphi 0, %s135
    %s150 = sphi 0, %s136
    %s154 = sphi 0, %s154
    %s156 = sphi 0, %s154
    %s157 = sphi 0, %s156
    %s171 = sphi 0, %s157
    %s175 = sphi 0, %s175
    %s177 = sphi 0, %s175
    %s178 = sphi 0, %s177
    %s192 = sphi 0, %s178
    %s196 = sphi 0, %s196
    %s198 = sphi 0, %s196
    %s199 = sphi 0, %s198
    %s213 = sphi 0, %s199
    %s219 = sphi 0, %s221
    %s222 = sphi 0, %s219
    %s223 = sphi 0, %s222
    %s239 = sphi 0, %s223
  $region4: #{_forward_impl.1} parent=0 // loop_header_branch
    %17 = sbr.rel (%p15) target = $region8
  $region5: #{_forward_impl.1} parent=0 // loop_body
    %s19 = ssub.s32 %s14, 1
    %s20 = ssub.s32 %s14, 2
    %s27 = sadd.s32 1, %s22
    %p28 = scmp.ge.s32.totalorder %s27, 1
    %s29 = scalar_select %p28, 0, %s27
    %s30 = sadd.s32 1, %s21
    %s31 = scalar_select %p28, %s30, %s21
    %p32 = scmp.ge.s32.totalorder %s31, 3
    %s33 = scalar_select %p32, 0, %s31
    %s34 = ssub.s32 %s22, %s29
    %p35 = scmp.eq.s32.totalorder %s34, 0
    %s37 = sadd.s32 %s36, 1
    %s38 = scalar_select %p35, %s36, %s37
    %p41 = pneg %p35
    %p42 = scmp.eq.s32.totalorder %s14, 2
    %p43 = por %p41, %p42
    %p44 = scmp.ne.s32.totalorder %s36, %s39
    %p45 = scmp.eq.s32.totalorder %s14, 0
    %p46 = por %p44, %p45
    %p47 = scmp.ne.s32.totalorder %s36, %s39
    %p48 = scmp.eq.s32.totalorder %s19, 2
    %p49 = por %p47, %p48
    %p50 = scmp.ne.s32.totalorder %s39, %s40
    %p51 = scmp.eq.s32.totalorder %s19, 0
    %p52 = por %p50, %p51
    %p53 = scmp.ne.s32.totalorder %s39, %s40
    %p54 = scmp.eq.s32.totalorder %s20, 2
    %p55 = por %p53, %p54
    %p57 = scmp.ne.s32.totalorder %s40, %s56
    %p58 = scmp.eq.s32.totalorder %s20, 0
    %p59 = por %p57, %p58
    %s61 = sadd.s32 %s60, 1
    %p64 = scmp.eq.s32.totalorder %s14, 2
    %p65 = scmp.ne.s32.totalorder %s60, %s62
    %p66 = scmp.eq.s32.totalorder %s14, 0
    %p67 = por %p65, %p66
    %p68 = scmp.ne.s32.totalorder %s60, %s62
    %p69 = scmp.eq.s32.totalorder %s19, 2
    %p70 = por %p68, %p69
    %p71 = scmp.ne.s32.totalorder %s62, %s63
    %p72 = scmp.eq.s32.totalorder %s19, 0
    %p73 = por %p71, %p72
    %p74 = scmp.ne.s32.totalorder %s62, %s63
    %p75 = scmp.eq.s32.totalorder %s20, 2
    %p76 = por %p74, %p75
    %p78 = scmp.ne.s32.totalorder %s63, %s77
    %p79 = scmp.eq.s32.totalorder %s20, 0
    %p80 = por %p78, %p79
    %s81 = ssub.s32 %s21, %s33
    %p82 = scmp.eq.s32.totalorder %s81, 0
    %s84 = sadd.s32 %s83, 1
    %s85 = scalar_select %p82, %s83, %s84
    %p88 = pneg %p82
    %p89 = scmp.eq.s32.totalorder %s14, 2
    %p90 = por %p88, %p89
    %p91 = scmp.ne.s32.totalorder %s83, %s86
    %p92 = scmp.eq.s32.totalorder %s14, 0
    %p93 = por %p91, %p92
    %p94 = scmp.ne.s32.totalorder %s83, %s86
    %p95 = scmp.eq.s32.totalorder %s19, 2
    %p96 = por %p94, %p95
    %p97 = scmp.ne.s32.totalorder %s86, %s87
    %p98 = scmp.eq.s32.totalorder %s19, 0
    %p99 = por %p97, %p98
    %p100 = scmp.ne.s32.totalorder %s86, %s87
    %p101 = scmp.eq.s32.totalorder %s20, 2
    %p102 = por %p100, %p101
    %p104 = scmp.ne.s32.totalorder %s87, %s103
    %p105 = scmp.eq.s32.totalorder %s20, 0
    %p106 = por %p104, %p105
    %s107 = ssub.s32 %s21, %s33
    %p108 = scmp.eq.s32.totalorder %s107, 0
    %s110 = sadd.s32 %s109, 1
    %s111 = scalar_select %p108, %s109, %s110
    %p114 = pneg %p108
    %p115 = scmp.eq.s32.totalorder %s14, 2
    %p116 = por %p114, %p115
    %p117 = scmp.ne.s32.totalorder %s109, %s112
    %p118 = scmp.eq.s32.totalorder %s14, 0
    %p119 = por %p117, %p118
    %p120 = scmp.ne.s32.totalorder %s109, %s112
    %p121 = scmp.eq.s32.totalorder %s19, 2
    %p122 = por %p120, %p121
    %p123 = scmp.ne.s32.totalorder %s112, %s113
    %p124 = scmp.eq.s32.totalorder %s19, 0
    %p125 = por %p123, %p124
    %p126 = scmp.ne.s32.totalorder %s112, %s113
    %p127 = scmp.eq.s32.totalorder %s20, 2
    %p128 = por %p126, %p127
    %p130 = scmp.ne.s32.totalorder %s113, %s129
    %p131 = scmp.eq.s32.totalorder %s20, 0
    %p132 = por %p130, %p131
    %s134 = sadd.s32 %s133, 1
    %p137 = scmp.eq.s32.totalorder %s14, 2
    %p138 = scmp.ne.s32.totalorder %s133, %s135
    %p139 = scmp.eq.s32.totalorder %s14, 0
    %p140 = por %p138, %p139
    %p141 = scmp.ne.s32.totalorder %s133, %s135
    %p142 = scmp.eq.s32.totalorder %s19, 2
    %p143 = por %p141, %p142
    %p144 = scmp.ne.s32.totalorder %s135, %s136
    %p145 = scmp.eq.s32.totalorder %s19, 0
    %p146 = por %p144, %p145
    %p147 = scmp.ne.s32.totalorder %s135, %s136
    %p148 = scmp.eq.s32.totalorder %s20, 2
    %p149 = por %p147, %p148
    %p151 = scmp.ne.s32.totalorder %s136, %s150
    %p152 = scmp.eq.s32.totalorder %s20, 0
    %p153 = por %p151, %p152
    %s155 = sadd.s32 %s154, 1
    %p158 = scmp.eq.s32.totalorder %s14, 2
    %p159 = scmp.ne.s32.totalorder %s154, %s156
    %p160 = scmp.eq.s32.totalorder %s14, 0
    %p161 = por %p159, %p160
    %p162 = scmp.ne.s32.totalorder %s154, %s156
    %p163 = scmp.eq.s32.totalorder %s19, 2
    %p164 = por %p162, %p163
    %p165 = scmp.ne.s32.totalorder %s156, %s157
    %p166 = scmp.eq.s32.totalorder %s19, 0
    %p167 = por %p165, %p166
    %p168 = scmp.ne.s32.totalorder %s156, %s157
    %p169 = scmp.eq.s32.totalorder %s20, 2
    %p170 = por %p168, %p169
    %p172 = scmp.ne.s32.totalorder %s157, %s171
    %p173 = scmp.eq.s32.totalorder %s20, 0
    %p174 = por %p172, %p173
    %s176 = sadd.s32 %s175, 1
    %p179 = scmp.eq.s32.totalorder %s14, 2
    %p180 = scmp.ne.s32.totalorder %s175, %s177
    %p181 = scmp.eq.s32.totalorder %s14, 0
    %p182 = por %p180, %p181
    %p183 = scmp.ne.s32.totalorder %s175, %s177
    %p184 = scmp.eq.s32.totalorder %s19, 2
    %p185 = por %p183, %p184
    %p186 = scmp.ne.s32.totalorder %s177, %s178
    %p187 = scmp.eq.s32.totalorder %s19, 0
    %p188 = por %p186, %p187
    %p189 = scmp.ne.s32.totalorder %s177, %s178
    %p190 = scmp.eq.s32.totalorder %s20, 2
    %p191 = por %p189, %p190
    %p193 = scmp.ne.s32.totalorder %s178, %s192
    %p194 = scmp.eq.s32.totalorder %s20, 0
    %p195 = por %p193, %p194
    %s197 = sadd.s32 %s196, 1
    %p200 = scmp.eq.s32.totalorder %s14, 2
    %p201 = scmp.ne.s32.totalorder %s196, %s198
    %p202 = scmp.eq.s32.totalorder %s14, 0
    %p203 = por %p201, %p202
    %p204 = scmp.ne.s32.totalorder %s196, %s198
    %p205 = scmp.eq.s32.totalorder %s19, 2
    %p206 = por %p204, %p205
    %p207 = scmp.ne.s32.totalorder %s198, %s199
    %p208 = scmp.eq.s32.totalorder %s19, 0
    %p209 = por %p207, %p208
    %p210 = scmp.ne.s32.totalorder %s198, %s199
    %p211 = scmp.eq.s32.totalorder %s20, 2
    %p212 = por %p210, %p211
    %p214 = scmp.ne.s32.totalorder %s199, %s213
    %p215 = scmp.eq.s32.totalorder %s20, 0
    %p216 = por %p214, %p215
    %s217 = ssub.s32 %s22, %s29
    %p218 = scmp.eq.s32.totalorder %s217, 0
    %s220 = sadd.s32 %s219, 1
    %s221 = scalar_select %p218, %s219, %s220
    %p224 = pneg %p218
    %p225 = scmp.eq.s32.totalorder %s14, 2
    %p226 = por %p224, %p225
    %p227 = scmp.ne.s32.totalorder %s219, %s222
    %p228 = scmp.eq.s32.totalorder %s14, 0
    %p229 = por %p227, %p228
    %p230 = scmp.ne.s32.totalorder %s219, %s222
    %p231 = scmp.eq.s32.totalorder %s19, 2
    %p232 = por %p230, %p231
    %p233 = scmp.ne.s32.totalorder %s222, %s223
    %p234 = scmp.eq.s32.totalorder %s19, 0
    %p235 = por %p233, %p234
    %p236 = scmp.ne.s32.totalorder %s222, %s223
    %p237 = scmp.eq.s32.totalorder %s20, 2
    %p238 = por %p236, %p237
    %p240 = scmp.ne.s32.totalorder %s223, %s239
    %p241 = scmp.eq.s32.totalorder %s20, 0
    %p242 = por %p240, %p241
    %p243 = scmp.le.s32.totalorder 1, %s14
    %p244 = scmp.lt.s32.totalorder %s14, 4
    %p245 = pnand %p243, %p244
    %p246 = pneg %p245
    // Predicated region
    $region9: #{_forward_impl.1} parent=5 // pred_check
      _
    $region10: #{_forward_impl.1} parent=5 // pred_check_branch
      %248 = sbr.rel (%p245) target = $region12
    $region11: #{_forward_impl.1} parent=5 // pred_region
      %s249 = ssub.s32 %s14, 1
      // Predicated region
      $region13: #{_forward_impl.1} parent=11 // pred_check
        %p250 = pneg %p52
      $region14: #{_forward_impl.1} parent=11 // pred_check_branch
        %252 = sbr.rel (%p250) target = $region16
      $region15: #{_forward_impl.1} parent=11 // pred_region
        %s253 = smul.u32 16, %s24
        %p254 = scmp.lt.s32.totalorder %s253, 15
        %s255 = scalar_select %p254, %s253, 15
        %s256 = smul.addr %s255, 4
        %s257 = scalar_lea.vmem %s0, %s256
        %s258 = smul.u32 16, %s24
      $region16: #{_forward_impl.1} parent=11 // pred_fallthru
        _
      // Predicated region
      $region17: #{_forward_impl.1} parent=11 // pred_check
        %p259 = pneg %p73
      $region18: #{_forward_impl.1} parent=11 // pred_check_branch
        %261 = sbr.rel (%p259) target = $region20
      $region19: #{_forward_impl.1} parent=11 // pred_region
        _
      $region20: #{_forward_impl.1} parent=11 // pred_fallthru
        _
      // Predicated region
      $region21: #{_forward_impl.1} parent=11 // pred_check
        %p262 = pneg %p146
      $region22: #{_forward_impl.1} parent=11 // pred_check_branch
        %264 = sbr.rel (%p262) target = $region24
      $region23: #{_forward_impl.1} parent=11 // pred_region
        _
      $region24: #{_forward_impl.1} parent=11 // pred_fallthru
        _
      // Predicated region
      $region25: #{_forward_impl.1} parent=11 // pred_check
        %p265 = pneg %p167
      $region26: #{_forward_impl.1} parent=11 // pred_check_branch
        %267 = sbr.rel (%p265) target = $region28
      $region27: #{_forward_impl.1} parent=11 // pred_region
        _
      $region28: #{_forward_impl.1} parent=11 // pred_fallthru
        _
      // Predicated region
      $region29: #{_forward_impl.1} parent=11 // pred_check
        %p268 = pneg %p188
      $region30: #{_forward_impl.1} parent=11 // pred_check_branch
        %270 = sbr.rel (%p268) target = $region32
      $region31: #{_forward_impl.1} parent=11 // pred_region
        _
      $region32: #{_forward_impl.1} parent=11 // pred_fallthru
        _
      // Predicated region
      $region33: #{_forward_impl.1} parent=11 // pred_check
        %p271 = pneg %p209
      $region34: #{_forward_impl.1} parent=11 // pred_check_branch
        %273 = sbr.rel (%p271) target = $region36
      $region35: #{_forward_impl.1} parent=11 // pred_region
        _
      $region36: #{_forward_impl.1} parent=11 // pred_fallthru
        _
    $region12: #{_forward_impl.1} parent=5 // pred_fallthru
      _
    %p274 = scmp.lt.s32.totalorder %s14, 3
    // Predicated region
    $region37: #{_forward_impl.1} parent=5 // pred_check
      %p275 = pneg %p274
    $region38: #{_forward_impl.1} parent=5 // pred_check_branch
      %277 = sbr.rel (%p275) target = $region40
    $region39: #{_forward_impl.1} parent=5 // pred_region
      // Predicated region
      $region41: #{_forward_impl.1} parent=39 // pred_check
        %p278 = pneg %p93
      $region42: #{_forward_impl.1} parent=39 // pred_check_branch
        %280 = sbr.rel (%p278) target = $region44
      $region43: #{_forward_impl.1} parent=39 // pred_region
        %p281 = scmp.lt.s32.totalorder %s21, 2
        %s282 = scalar_select %p281, %s21, 2
        %s283 = smul.addr %s282, 16
        %s284 = smul.addr %s283, 4
        %s285 = scalar_lea.vmem %s2, %s284
      $region44: #{_forward_impl.1} parent=39 // pred_fallthru
        _
      // Predicated region
      $region45: #{_forward_impl.1} parent=39 // pred_check
        %p286 = pneg %p119
      $region46: #{_forward_impl.1} parent=39 // pred_check_branch
        %288 = sbr.rel (%p286) target = $region48
      $region47: #{_forward_impl.1} parent=39 // pred_region
        %p289 = scmp.lt.s32.totalorder %s21, 2
        %s290 = scalar_select %p289, %s21, 2
        %s291 = scalar_lea.vmem %s3, %s290
      $region48: #{_forward_impl.1} parent=39 // pred_fallthru
        _
    $region40: #{_forward_impl.1} parent=5 // pred_fallthru
      _
    %p292 = scmp.le.s32.totalorder 1, %s14
    %p293 = scmp.lt.s32.totalorder %s14, 4
    %p294 = pnand %p292, %p293
    %p295 = pneg %p294
    // Predicated region
    $region49: #{_forward_impl.1} parent=5 // pred_check
      _
    $region50: #{_forward_impl.1} parent=5 // pred_check_branch
      %297 = sbr.rel (%p294) target = $region52
    $region51: #{_forward_impl.1} parent=5 // pred_region
      %s298 = ssub.s32 %s14, 1
      %s299 = smul.u32 16, %s24
      %p300 = scmp.lt.s32.totalorder %s299, 15
      %s301 = scalar_select %p300, %s299, 15
      %s302 = smul.addr %s301, 4
      %s303 = scalar_lea.vmem %s0, %s302
      %p304 = pneg %p52
      %p305 = pneg %p49
      %p306 = pneg %p73
      %p307 = pneg %p70
      %p308 = scmp.lt.s32.totalorder %s23, 2
      %s309 = scalar_select %p308, %s23, 2
      %s310 = smul.addr %s309, 16
      %s311 = smul.addr %s310, 4
      %s312 = scalar_lea.vmem %s2, %s311
      %p313 = pneg %p99
      %p314 = pneg %p96
      %p315 = scmp.lt.s32.totalorder %s23, 2
      %s316 = scalar_select %p315, %s23, 2
      %s317 = scalar_lea.vmem %s3, %s316
      %p318 = pneg %p125
      %p319 = pneg %p122
      %p320 = pneg %p146
      %p321 = pneg %p143
      %p322 = pneg %p167
      %p323 = pneg %p164
      %p324 = pneg %p188
      %p325 = pneg %p185
      %p326 = pneg %p209
      %p327 = pneg %p206
      %p328 = pneg %p235
      %p329 = pneg %p232
      %s330 = smul.u32 16, %s24
      %p331 = scmp.lt.s32.totalorder %s330, 15
      %s332 = scalar_select %p331, %s330, 15
      %s333 = smul.addr %s332, 8
      %s334 = scalar_lea.vmem %s8, %s333
      %s335 = smul.u32 16, %s24
      %p336 = scmp.lt.s32.totalorder %s335, 15
      %s337 = scalar_select %p336, %s335, 15
      %s338 = smul.addr %s337, 4
      %s339 = scalar_lea.vmem %s0, %s338
      %s340 = smul.u32 16, %s24
      %p341 = scmp.lt.s32.totalorder %s23, 2
      %s342 = scalar_select %p341, %s23, 2
      %s343 = smul.addr %s342, 16
      %s344 = smul.addr %s343, 4
      %s345 = scalar_lea.vmem %s2, %s344
      %p346 = scmp.lt.s32.totalorder %s23, 2
      %s347 = scalar_select %p346, %s23, 2
      %s348 = scalar_lea.vmem %s3, %s347
      %s349 = smul.u32 16, %s24
      %p350 = scmp.lt.s32.totalorder %s349, 15
      %s351 = scalar_select %p350, %s349, 15
      %s352 = smul.addr %s351, 8
      %s353 = scalar_lea.vmem %s8, %s352
      %s354 = smul.u32 16, %s24
      %s356 = smul.u32 %s24, 128
      %p357 = scmp.eq.s32.totalorder %s24, 0
      // Predicated region
      $region53: #{_forward_impl.1} parent=51 // pred_check
        %p358 = pneg %p357
      $region54: #{_forward_impl.1} parent=51 // pred_check_branch
        %360 = sbr.rel (%p358) target = $region56
      $region55: #{_forward_impl.1} parent=51 // pred_region
        %p361 = scmp.eq.s32.totalorder %s23, 0
        // Predicated region
        $region57: #{_forward_impl.1} parent=55 // pred_check
          %p362 = pneg %p361
        $region58: #{_forward_impl.1} parent=55 // pred_check_branch
          %364 = sbr.rel (%p362) target = $region60
        $region59: #{_forward_impl.1} parent=55 // pred_region
          %v365 = vld [vmem:[%s1] sm:$0xf]
          %v366 = vld [vmem:[%s1 + $0x4] sm:$0xf]
          %v367 = vld [vmem:[%s1 + $0x8] sm:$0xf]
          %v368 = vld [vmem:[%s1 + $0xc] sm:$0xf]
          %v369 = vld [vmem:[%s1 + $0x10] sm:$0xf]
          %v370 = vld [vmem:[%s1 + $0x14] sm:$0xf]
          %v371 = vld [vmem:[%s1 + $0x18] sm:$0xf]
          %v372 = vld [vmem:[%s1 + $0x1c] sm:$0xf]
          %v373 = vld [vmem:[%s1 + $0x20] sm:$0xf]
          %v374 = vld [vmem:[%s1 + $0x24] sm:$0xf]
          %v375 = vld [vmem:[%s1 + $0x28] sm:$0xf]
          %v376 = vld [vmem:[%s1 + $0x2c] sm:$0xf]
          %v377 = vld [vmem:[%s1 + $0x30] sm:$0xf]
          %v378 = vld [vmem:[%s1 + $0x34] sm:$0xf]
          %v379 = vld [vmem:[%s1 + $0x38] sm:$0xf]
          %v380 = vld [vmem:[%s1 + $0x3c] sm:$0xf]
          %v381 = vld [vmem:[%s345] sm:$0xf]
          %v382 = vld [vmem:[%s345 + $0x4] sm:$0xf]
          %v383 = vld [vmem:[%s345 + $0x8] sm:$0xf]
          %v384 = vld [vmem:[%s345 + $0xc] sm:$0xf]
          %v385 = vld [vmem:[%s345 + $0x10] sm:$0xf]
          %v386 = vld [vmem:[%s345 + $0x14] sm:$0xf]
          %v387 = vld [vmem:[%s345 + $0x18] sm:$0xf]
          %v388 = vld [vmem:[%s345 + $0x1c] sm:$0xf]
          %v389 = vld [vmem:[%s345 + $0x20] sm:$0xf]
          %v390 = vld [vmem:[%s345 + $0x24] sm:$0xf]
          %v391 = vld [vmem:[%s345 + $0x28] sm:$0xf]
          %v392 = vld [vmem:[%s345 + $0x2c] sm:$0xf]
          %v393 = vld [vmem:[%s345 + $0x30] sm:$0xf]
          %v394 = vld [vmem:[%s345 + $0x34] sm:$0xf]
          %v395 = vld [vmem:[%s345 + $0x38] sm:$0xf]
          %v396 = vld [vmem:[%s345 + $0x3c] sm:$0xf]
          %v413 = vunpack.c.l.b16 %v365
          %v414 = vunpack.c.l.b16 %v366
          %v415 = vunpack.c.l.b16 %v367
          %v416 = vunpack.c.l.b16 %v368
          %v417 = vunpack.c.l.b16 %v369
          %v418 = vunpack.c.l.b16 %v370
          %v419 = vunpack.c.l.b16 %v371
          %v420 = vunpack.c.l.b16 %v372
          %v421 = vunpack.c.l.b16 %v373
          %v422 = vunpack.c.l.b16 %v374
          %v423 = vunpack.c.l.b16 %v375
          %v424 = vunpack.c.l.b16 %v376
          %v425 = vunpack.c.l.b16 %v377
          %v426 = vunpack.c.l.b16 %v378
          %v427 = vunpack.c.l.b16 %v379
          %v428 = vunpack.c.l.b16 %v380
          %v429 = vpack.c.b16 %v414, %v413
          %v430 = vpack.c.b16 %v416, %v415
          %v431 = vpack.c.b16 %v418, %v417
          %v432 = vpack.c.b16 %v420, %v419
          %v433 = vpack.c.b16 %v422, %v421
          %v434 = vpack.c.b16 %v424, %v423
          %v435 = vpack.c.b16 %v426, %v425
          %v436 = vpack.c.b16 %v428, %v427
          %v461 = vunpack.c.l.b16 %v381
          %v462 = vunpack.c.l.b16 %v382
          %v463 = vunpack.c.l.b16 %v383
          %v464 = vunpack.c.l.b16 %v384
          %v465 = vunpack.c.l.b16 %v385
          %v466 = vunpack.c.l.b16 %v386
          %v467 = vunpack.c.l.b16 %v387
          %v468 = vunpack.c.l.b16 %v388
          %v469 = vunpack.c.l.b16 %v389
          %v470 = vunpack.c.l.b16 %v390
          %v471 = vunpack.c.l.b16 %v391
          %v472 = vunpack.c.l.b16 %v392
          %v473 = vunpack.c.l.b16 %v393
          %v474 = vunpack.c.l.b16 %v394
          %v475 = vunpack.c.l.b16 %v395
          %v476 = vunpack.c.l.b16 %v396
          %v477 = vpack.c.b16 %v462, %v461
          %v478 = vpack.c.b16 %v464, %v463
          %v479 = vpack.c.b16 %v466, %v465
          %v480 = vpack.c.b16 %v468, %v467
          %v481 = vpack.c.b16 %v470, %v469
          %v482 = vpack.c.b16 %v472, %v471
          %v483 = vpack.c.b16 %v474, %v473
          %v484 = vpack.c.b16 %v476, %v475
          %493 = vmatprep.subr.bf16.mxu0 0
          %494 = vmatpush1.bf16.msra.mxu0 %v477
          %495 = vmatprep.subr.bf16.mxu0 0
          %496 = vmatpush1.bf16.msra.mxu0 %v478
          %497 = vmatprep.subr.bf16.mxu0 0
          %498 = vmatpush1.bf16.msra.mxu0 %v479
          %499 = vmatprep.subr.bf16.mxu0 0
          %500 = vmatpush1.bf16.msra.mxu0 %v480
          %501 = vmatprep.subr.bf16.mxu0 0
          %502 = vmatpush1.bf16.msra.mxu0 %v481
          %503 = vmatprep.subr.bf16.mxu0 0
          %504 = vmatpush1.bf16.msra.mxu0 %v482
          %505 = vmatprep.subr.bf16.mxu0 0
          %506 = vmatpush1.bf16.msra.mxu0 %v483
          %507 = vmatprep.subr.bf16.mxu0 0
          %508 = vmatpush1.bf16.msra.mxu0 %v484
          %509 = vmatprep.subr.bf16.mxu0 0
          %510 = vmatpush1.bf16.msra.mxu0 0
          %511 = vmatprep.subr.bf16.mxu0 0
          %512 = vmatpush1.bf16.msra.mxu0 0
          %513 = vmatprep.subr.bf16.mxu0 0
          %514 = vmatpush1.bf16.msra.mxu0 0
          %515 = vmatprep.subr.bf16.mxu0 0
          %516 = vmatpush1.bf16.msra.mxu0 0
          %517 = vmatprep.subr.bf16.mxu0 0
          %518 = vmatpush1.bf16.msra.mxu0 0
          %519 = vmatprep.subr.bf16.mxu0 0
          %520 = vmatpush1.bf16.msra.mxu0 0
          %521 = vmatprep.subr.bf16.mxu0 0
          %522 = vmatpush1.bf16.msra.mxu0 0
          %523 = vmatprep.subr.bf16.mxu0 0
          %524 = vmatpush1.bf16.msra.mxu0 0
          %525 = vmatprep.mubr.bf16.mxu0 0
          %526 = vmatmul.mubr.bf16.gmra.mrb[0].mxu0 %v429
          %v527 = vpop.f32.mrb[0].mxu0
          %v528 = vadd.f32 0.0, %v527
          %v529 = vpop.f32.mrb[0].mxu0
          %v530 = vpop.f32.mrb[0].mxu0
          %v531 = vadd.f32 0.0, %v530
          %v532 = vpop.f32.mrb[0].mxu0
          %533 = vmatprep.mubr.bf16.mxu0 0
          %534 = vmatmul.mubr.bf16.gmra.mrb[0].mxu0 %v430
          %v535 = vpop.f32.mrb[0].mxu0
          %v536 = vadd.f32 0.0, %v535
          %v537 = vpop.f32.mrb[0].mxu0
          %v538 = vpop.f32.mrb[0].mxu0
          %v539 = vadd.f32 0.0, %v538
          %v540 = vpop.f32.mrb[0].mxu0
          %541 = vmatprep.mubr.bf16.mxu0 0
          %542 = vmatmul.mubr.bf16.gmra.mrb[0].mxu0 %v431
          %v543 = vpop.f32.mrb[0].mxu0
          %v544 = vadd.f32 0.0, %v543
          %v545 = vpop.f32.mrb[0].mxu0
          %v546 = vpop.f32.mrb[0].mxu0
          %v547 = vadd.f32 0.0, %v546
          %v548 = vpop.f32.mrb[0].mxu0
          %549 = vmatprep.mubr.bf16.mxu0 0
          %550 = vmatmul.mubr.bf16.gmra.mrb[0].mxu0 %v432
          %v551 = vpop.f32.mrb[0].mxu0
          %v552 = vadd.f32 0.0, %v551
          %v553 = vpop.f32.mrb[0].mxu0
          %v554 = vpop.f32.mrb[0].mxu0
          %v555 = vadd.f32 0.0, %v554
          %v556 = vpop.f32.mrb[0].mxu0
          %557 = vmatprep.mubr.bf16.mxu0 0
          %558 = vmatmul.mubr.bf16.gmra.mrb[0].mxu0 %v433
          %v559 = vpop.f32.mrb[0].mxu0
          %v560 = vadd.f32 0.0, %v559
          %v561 = vpop.f32.mrb[0].mxu0
          %v562 = vpop.f32.mrb[0].mxu0
          %v563 = vadd.f32 0.0, %v562
          %v564 = vpop.f32.mrb[0].mxu0
          %565 = vmatprep.mubr.bf16.mxu0 0
          %566 = vmatmul.mubr.bf16.gmra.mrb[0].mxu0 %v434
          %v567 = vpop.f32.mrb[0].mxu0
          %v568 = vadd.f32 0.0, %v567
          %v569 = vpop.f32.mrb[0].mxu0
          %v570 = vpop.f32.mrb[0].mxu0
          %v571 = vadd.f32 0.0, %v570
          %v572 = vpop.f32.mrb[0].mxu0
          %573 = vmatprep.mubr.bf16.mxu0 0
          %574 = vmatmul.mubr.bf16.gmra.mrb[0].mxu0 %v435
          %v575 = vpop.f32.mrb[0].mxu0
          %v576 = vadd.f32 0.0, %v575
          %v577 = vpop.f32.mrb[0].mxu0
          %v578 = vpop.f32.mrb[0].mxu0
          %v579 = vadd.f32 0.0, %v578
          %v580 = vpop.f32.mrb[0].mxu0
          %581 = vmatprep.mubr.bf16.mxu0 0
          %582 = vmatmul.mubr.bf16.gmra.mrb[0].mxu0 %v436
          %v583 = vpop.f32.mrb[0].mxu0
          %v584 = vadd.f32 0.0, %v583
          %v585 = vpop.f32.mrb[0].mxu0
          %v586 = vpop.f32.mrb[0].mxu0
          %v587 = vadd.f32 0.0, %v586
          %v588 = vpop.f32.mrb[0].mxu0
          %589 = vdwg.mxu0
          %v590 = vpack.c.bf16 %v531, %v528
          %v591 = vpack.c.bf16 %v539, %v536
          %v592 = vpack.c.bf16 %v547, %v544
          %v593 = vpack.c.bf16 %v555, %v552
          %v594 = vpack.c.bf16 %v563, %v560
          %v595 = vpack.c.bf16 %v571, %v568
          %v596 = vpack.c.bf16 %v579, %v576
          %v597 = vpack.c.bf16 %v587, %v584
          %598 = vst [vmem:[#allocation2] sm:$0xff] %v590
          %599 = vst [vmem:[#allocation2 + $0x8] sm:$0xff] %v591
          %600 = vst [vmem:[#allocation2 + $0x10] sm:$0xff] %v592
          %601 = vst [vmem:[#allocation2 + $0x18] sm:$0xff] %v593
          %602 = vst [vmem:[#allocation2 + $0x20] sm:$0xff] %v594
          %603 = vst [vmem:[#allocation2 + $0x28] sm:$0xff] %v595
          %604 = vst [vmem:[#allocation2 + $0x30] sm:$0xff] %v596
          %605 = vst [vmem:[#allocation2 + $0x38] sm:$0xff] %v597
        $region60: #{_forward_impl.1} parent=55 // pred_fallthru
          _
        %p606 = scmp.gt.s32.totalorder %s23, 0
        // Predicated region
        $region61: #{_forward_impl.1} parent=55 // pred_check
          %p607 = pneg %p606
        $region62: #{_forward_impl.1} parent=55 // pred_check_branch
          %609 = sbr.rel (%p607) target = $region64
        $region63: #{_forward_impl.1} parent=55 // pred_region
          %v610 = vld [vmem:[#allocation3] sm:$0xff]
          %v611 = vld [vmem:[#allocation3 + $0x8] sm:$0xff]
          %v612 = vld [vmem:[#allocation3 + $0x10] sm:$0xff]
          %v613 = vld [vmem:[#allocation3 + $0x18] sm:$0xff]
          %v614 = vld [vmem:[#allocation3 + $0x20] sm:$0xff]
          %v615 = vld [vmem:[#allocation3 + $0x28] sm:$0xff]
          %v616 = vld [vmem:[#allocation3 + $0x30] sm:$0xff]
          %v617 = vld [vmem:[#allocation3 + $0x38] sm:$0xff]
          %v618 = vld [vmem:[%s345] sm:$0xf]
          %v619 = vld [vmem:[%s345 + $0x4] sm:$0xf]
          %v620 = vld [vmem:[%s345 + $0x8] sm:$0xf]
          %v621 = vld [vmem:[%s345 + $0xc] sm:$0xf]
          %v622 = vld [vmem:[%s345 + $0x10] sm:$0xf]
          %v623 = vld [vmem:[%s345 + $0x14] sm:$0xf]
          %v624 = vld [vmem:[%s345 + $0x18] sm:$0xf]
          %v625 = vld [vmem:[%s345 + $0x1c] sm:$0xf]
          %v626 = vld [vmem:[%s345 + $0x20] sm:$0xf]
          %v627 = vld [vmem:[%s345 + $0x24] sm:$0xf]
          %v628 = vld [vmem:[%s345 + $0x28] sm:$0xf]
          %v629 = vld [vmem:[%s345 + $0x2c] sm:$0xf]
          %v630 = vld [vmem:[%s345 + $0x30] sm:$0xf]
          %v631 = vld [vmem:[%s345 + $0x34] sm:$0xf]
          %v632 = vld [vmem:[%s345 + $0x38] sm:$0xf]
          %v633 = vld [vmem:[%s345 + $0x3c] sm:$0xf]
          %v650 = vunpack.c.l.b16 %v618
          %v651 = vunpack.c.l.b16 %v619
          %v652 = vunpack.c.l.b16 %v620
          %v653 = vunpack.c.l.b16 %v621
          %v654 = vunpack.c.l.b16 %v622
          %v655 = vunpack.c.l.b16 %v623
          %v656 = vunpack.c.l.b16 %v624
          %v657 = vunpack.c.l.b16 %v625
          %v658 = vunpack.c.l.b16 %v626
          %v659 = vunpack.c.l.b16 %v627
          %v660 = vunpack.c.l.b16 %v628
          %v661 = vunpack.c.l.b16 %v629
          %v662 = vunpack.c.l.b16 %v630
          %v663 = vunpack.c.l.b16 %v631
          %v664 = vunpack.c.l.b16 %v632
          %v665 = vunpack.c.l.b16 %v633
          %v666 = vpack.c.b16 %v651, %v650
          %v667 = vpack.c.b16 %v653, %v652
          %v668 = vpack.c.b16 %v655, %v654
          %v669 = vpack.c.b16 %v657, %v656
          %v670 = vpack.c.b16 %v659, %v658
          %v671 = vpack.c.b16 %v661, %v660
          %v672 = vpack.c.b16 %v663, %v662
          %v673 = vpack.c.b16 %v665, %v664
          %682 = vmatprep.subr.bf16.mxu0 0
          %683 = vmatpush1.bf16.msra.mxu0 %v666
          %684 = vmatprep.subr.bf16.mxu0 0
          %685 = vmatpush1.bf16.msra.mxu0 %v667
          %686 = vmatprep.subr.bf16.mxu0 0
          %687 = vmatpush1.bf16.msra.mxu0 %v668
          %688 = vmatprep.subr.bf16.mxu0 0
          %689 = vmatpush1.bf16.msra.mxu0 %v669
          %690 = vmatprep.subr.bf16.mxu0 0
          %691 = vmatpush1.bf16.msra.mxu0 %v670
          %692 = vmatprep.subr.bf16.mxu0 0
          %693 = vmatpush1.bf16.msra.mxu0 %v671
          %694 = vmatprep.subr.bf16.mxu0 0
          %695 = vmatpush1.bf16.msra.mxu0 %v672
          %696 = vmatprep.subr.bf16.mxu0 0
          %697 = vmatpush1.bf16.msra.mxu0 %v673
          %698 = vmatprep.subr.bf16.mxu0 0
          %699 = vmatpush1.bf16.msra.mxu0 0
          %700 = vmatprep.subr.bf16.mxu0 0
          %701 = vmatpush1.bf16.msra.mxu0 0
          %702 = vmatprep.subr.bf16.mxu0 0
          %703 = vmatpush1.bf16.msra.mxu0 0
          %704 = vmatprep.subr.bf16.mxu0 0
          %705 = vmatpush1.bf16.msra.mxu0 0
          %706 = vmatprep.subr.bf16.mxu0 0
          %707 = vmatpush1.bf16.msra.mxu0 0
          %708 = vmatprep.subr.bf16.mxu0 0
          %709 = vmatpush1.bf16.msra.mxu0 0
          %710 = vmatprep.subr.bf16.mxu0 0
          %711 = vmatpush1.bf16.msra.mxu0 0
          %712 = vmatprep.subr.bf16.mxu0 0
          %713 = vmatpush1.bf16.msra.mxu0 0
          %714 = vmatprep.mubr.bf16.mxu0 0
          %715 = vmatmul.mubr.bf16.gmra.mrb[0].mxu0 %v610
          %v716 = vpop.f32.mrb[0].mxu0
          %v717 = vadd.f32 0.0, %v716
          %v718 = vpop.f32.mrb[0].mxu0
          %v719 = vpop.f32.mrb[0].mxu0
          %v720 = vadd.f32 0.0, %v719
          %v721 = vpop.f32.mrb[0].mxu0
          %722 = vmatprep.mubr.bf16.mxu0 0
          %723 = vmatmul.mubr.bf16.gmra.mrb[0].mxu0 %v611
          %v724 = vpop.f32.mrb[0].mxu0
          %v725 = vadd.f32 0.0, %v724
          %v726 = vpop.f32.mrb[0].mxu0
          %v727 = vpop.f32.mrb[0].mxu0
          %v728 = vadd.f32 0.0, %v727
          %v729 = vpop.f32.mrb[0].mxu0
          %730 = vmatprep.mubr.bf16.mxu0 0
          %731 = vmatmul.mubr.bf16.gmra.mrb[0].mxu0 %v612
          %v732 = vpop.f32.mrb[0].mxu0
          %v733 = vadd.f32 0.0, %v732
          %v734 = vpop.f32.mrb[0].mxu0
          %v735 = vpop.f32.mrb[0].mxu0
          %v736 = vadd.f32 0.0, %v735
          %v737 = vpop.f32.mrb[0].mxu0
          %738 = vmatprep.mubr.bf16.mxu0 0
          %739 = vmatmul.mubr.bf16.gmra.mrb[0].mxu0 %v613
          %v740 = vpop.f32.mrb[0].mxu0
          %v741 = vadd.f32 0.0, %v740
          %v742 = vpop.f32.mrb[0].mxu0
          %v743 = vpop.f32.mrb[0].mxu0
          %v744 = vadd.f32 0.0, %v743
          %v745 = vpop.f32.mrb[0].mxu0
          %746 = vmatprep.mubr.bf16.mxu0 0
          %747 = vmatmul.mubr.bf16.gmra.mrb[0].mxu0 %v614
          %v748 = vpop.f32.mrb[0].mxu0
          %v749 = vadd.f32 0.0, %v748
          %v750 = vpop.f32.mrb[0].mxu0
          %v751 = vpop.f32.mrb[0].mxu0
          %v752 = vadd.f32 0.0, %v751
          %v753 = vpop.f32.mrb[0].mxu0
          %754 = vmatprep.mubr.bf16.mxu0 0
          %755 = vmatmul.mubr.bf16.gmra.mrb[0].mxu0 %v615
          %v756 = vpop.f32.mrb[0].mxu0
          %v757 = vadd.f32 0.0, %v756
          %v758 = vpop.f32.mrb[0].mxu0
          %v759 = vpop.f32.mrb[0].mxu0
          %v760 = vadd.f32 0.0, %v759
          %v761 = vpop.f32.mrb[0].mxu0
          %762 = vmatprep.mubr.bf16.mxu0 0
          %763 = vmatmul.mubr.bf16.gmra.mrb[0].mxu0 %v616
          %v764 = vpop.f32.mrb[0].mxu0
          %v765 = vadd.f32 0.0, %v764
          %v766 = vpop.f32.mrb[0].mxu0
          %v767 = vpop.f32.mrb[0].mxu0
          %v768 = vadd.f32 0.0, %v767
          %v769 = vpop.f32.mrb[0].mxu0
          %770 = vmatprep.mubr.bf16.mxu0 0
          %771 = vmatmul.mubr.bf16.gmra.mrb[0].mxu0 %v617
          %v772 = vpop.f32.mrb[0].mxu0
          %v773 = vadd.f32 0.0, %v772
          %v774 = vpop.f32.mrb[0].mxu0
          %v775 = vpop.f32.mrb[0].mxu0
          %v776 = vadd.f32 0.0, %v775
          %v777 = vpop.f32.mrb[0].mxu0
          %778 = vdwg.mxu0
          %v779 = vpack.c.bf16 %v720, %v717
          %v780 = vpack.c.bf16 %v728, %v725
          %v781 = vpack.c.bf16 %v736, %v733
          %v782 = vpack.c.bf16 %v744, %v741
          %v783 = vpack.c.bf16 %v752, %v749
          %v784 = vpack.c.bf16 %v760, %v757
          %v785 = vpack.c.bf16 %v768, %v765
          %v786 = vpack.c.bf16 %v776, %v773
          %787 = vst [vmem:[#allocation2] sm:$0xff] %v779
          %788 = vst [vmem:[#allocation2 + $0x8] sm:$0xff] %v780
          %789 = vst [vmem:[#allocation2 + $0x10] sm:$0xff] %v781
          %790 = vst [vmem:[#allocation2 + $0x18] sm:$0xff] %v782
          %791 = vst [vmem:[#allocation2 + $0x20] sm:$0xff] %v783
          %792 = vst [vmem:[#allocation2 + $0x28] sm:$0xff] %v784
          %793 = vst [vmem:[#allocation2 + $0x30] sm:$0xff] %v785
          %794 = vst [vmem:[#allocation2 + $0x38] sm:$0xff] %v786
        $region64: #{_forward_impl.1} parent=55 // pred_fallthru
          _
      $region56: #{_forward_impl.1} parent=51 // pred_fallthru
        _
      %v795 = vld [vmem:[%s339] sm:$0xf]
      %v796 = vld [vmem:[%s339 + $0x4] sm:$0xf]
      %v797 = vld [vmem:[%s339 + $0x8] sm:$0xf]
      %v798 = vld [vmem:[%s339 + $0xc] sm:$0xf]
      %v799 = vld [vmem:[%s339 + $0x10] sm:$0xf]
      %v800 = vld [vmem:[%s339 + $0x14] sm:$0xf]
      %v801 = vld [vmem:[%s339 + $0x18] sm:$0xf]
      %v802 = vld [vmem:[%s339 + $0x1c] sm:$0xf]
      %v803 = vld [vmem:[%s339 + $0x20] sm:$0xf]
      %v804 = vld [vmem:[%s339 + $0x24] sm:$0xf]
      %v805 = vld [vmem:[%s339 + $0x28] sm:$0xf]
      %v806 = vld [vmem:[%s339 + $0x2c] sm:$0xf]
      %v807 = vld [vmem:[%s339 + $0x30] sm:$0xf]
      %v808 = vld [vmem:[%s339 + $0x34] sm:$0xf]
      %v809 = vld [vmem:[%s339 + $0x38] sm:$0xf]
      %v810 = vld [vmem:[%s339 + $0x3c] sm:$0xf]
      %v811 = vld [vmem:[#allocation2] sm:$0xff]
      %v812 = vld [vmem:[#allocation2 + $0x8] sm:$0xff]
      %v813 = vld [vmem:[#allocation2 + $0x10] sm:$0xff]
      %v814 = vld [vmem:[#allocation2 + $0x18] sm:$0xff]
      %v815 = vld [vmem:[#allocation2 + $0x20] sm:$0xff]
      %v816 = vld [vmem:[#allocation2 + $0x28] sm:$0xff]
      %v817 = vld [vmem:[#allocation2 + $0x30] sm:$0xff]
      %v818 = vld [vmem:[#allocation2 + $0x38] sm:$0xff]
      %v819 = vld [vmem:[%s348] sm:$0x1]
      %v821 = vlaneseq
      %v822 = vshrl.u32 %v821, 7
      %v823 = vsub.s32 0, %v822
      %v824 = vrot.slane %v819, %v823
      %v842 = vunpack.c.l.b16 %v795
      %v843 = vunpack.c.l.b16 %v796
      %v844 = vunpack.c.l.b16 %v797
      %v845 = vunpack.c.l.b16 %v798
      %v846 = vunpack.c.l.b16 %v799
      %v847 = vunpack.c.l.b16 %v800
      %v848 = vunpack.c.l.b16 %v801
      %v849 = vunpack.c.l.b16 %v802
      %v850 = vunpack.c.l.b16 %v803
      %v851 = vunpack.c.l.b16 %v804
      %v852 = vunpack.c.l.b16 %v805
      %v853 = vunpack.c.l.b16 %v806
      %v854 = vunpack.c.l.b16 %v807
      %v855 = vunpack.c.l.b16 %v808
      %v856 = vunpack.c.l.b16 %v809
      %v857 = vunpack.c.l.b16 %v810
      %v858 = vpack.c.b16 %v843, %v842
      %v859 = vpack.c.b16 %v845, %v844
      %v860 = vpack.c.b16 %v847, %v846
      %v861 = vpack.c.b16 %v849, %v848
      %v862 = vpack.c.b16 %v851, %v850
      %v863 = vpack.c.b16 %v853, %v852
      %v864 = vpack.c.b16 %v855, %v854
      %v865 = vpack.c.b16 %v857, %v856
      %874 = vmatprep.subr.bf16.mxu0 0
      %875 = vmatpush1.bf16.msra.mxu0 %v811
      %876 = vmatprep.subr.bf16.mxu0 0
      %877 = vmatpush1.bf16.msra.mxu0 %v812
      %878 = vmatprep.subr.bf16.mxu0 0
      %879 = vmatpush1.bf16.msra.mxu0 %v813
      %880 = vmatprep.subr.bf16.mxu0 0
      %881 = vmatpush1.bf16.msra.mxu0 %v814
      %882 = vmatprep.subr.bf16.mxu0 0
      %883 = vmatpush1.bf16.msra.mxu0 %v815
      %884 = vmatprep.subr.bf16.mxu0 0
      %885 = vmatpush1.bf16.msra.mxu0 %v816
      %886 = vmatprep.subr.bf16.mxu0 0
      %887 = vmatpush1.bf16.msra.mxu0 %v817
      %888 = vmatprep.subr.bf16.mxu0 0
      %889 = vmatpush1.bf16.msra.mxu0 %v818
      %890 = vmatprep.subr.bf16.mxu0 0
      %891 = vmatpush1.bf16.msra.mxu0 0
      %892 = vmatprep.subr.bf16.mxu0 0
      %893 = vmatpush1.bf16.msra.mxu0 0
      %894 = vmatprep.subr.bf16.mxu0 0
      %895 = vmatpush1.bf16.msra.mxu0 0
      %896 = vmatprep.subr.bf16.mxu0 0
      %897 = vmatpush1.bf16.msra.mxu0 0
      %898 = vmatprep.subr.bf16.mxu0 0
      %899 = vmatpush1.bf16.msra.mxu0 0
      %900 = vmatprep.subr.bf16.mxu0 0
      %901 = vmatpush1.bf16.msra.mxu0 0
      %902 = vmatprep.subr.bf16.mxu0 0
      %903 = vmatpush1.bf16.msra.mxu0 0
      %904 = vmatprep.subr.bf16.mxu0 0
      %905 = vmatpush1.bf16.msra.mxu0 0
      %906 = vmatprep.mubr.bf16.mxu0 0
      %907 = vmatmul.mubr.bf16.gmra.mrb[0].mxu0 %v858
      %v908 = vpop.f32.mrb[0].mxu0
      %v909 = vadd.f32 %v824, %v908
      %v910 = vpop.f32.mrb[0].mxu0
      %v911 = vpop.f32.mrb[0].mxu0
      %v912 = vadd.f32 %v824, %v911
      %v913 = vpop.f32.mrb[0].mxu0
      %914 = vmatprep.mubr.bf16.mxu0 0
      %915 = vmatmul.mubr.bf16.gmra.mrb[0].mxu0 %v859
      %v916 = vpop.f32.mrb[0].mxu0
      %v917 = vadd.f32 %v824, %v916
      %v918 = vpop.f32.mrb[0].mxu0
      %v919 = vpop.f32.mrb[0].mxu0
      %v920 = vadd.f32 %v824, %v919
      %v921 = vpop.f32.mrb[0].mxu0
      %922 = vmatprep.mubr.bf16.mxu0 0
      %923 = vmatmul.mubr.bf16.gmra.mrb[0].mxu0 %v860
      %v924 = vpop.f32.mrb[0].mxu0
      %v925 = vadd.f32 %v824, %v924
      %v926 = vpop.f32.mrb[0].mxu0
      %v927 = vpop.f32.mrb[0].mxu0
      %v928 = vadd.f32 %v824, %v927
      %v929 = vpop.f32.mrb[0].mxu0
      %930 = vmatprep.mubr.bf16.mxu0 0
      %931 = vmatmul.mubr.bf16.gmra.mrb[0].mxu0 %v861
      %v932 = vpop.f32.mrb[0].mxu0
      %v933 = vadd.f32 %v824, %v932
      %v934 = vpop.f32.mrb[0].mxu0
      %v935 = vpop.f32.mrb[0].mxu0
      %v936 = vadd.f32 %v824, %v935
      %v937 = vpop.f32.mrb[0].mxu0
      %938 = vmatprep.mubr.bf16.mxu0 0
      %939 = vmatmul.mubr.bf16.gmra.mrb[0].mxu0 %v862
      %v940 = vpop.f32.mrb[0].mxu0
      %v941 = vadd.f32 %v824, %v940
      %v942 = vpop.f32.mrb[0].mxu0
      %v943 = vpop.f32.mrb[0].mxu0
      %v944 = vadd.f32 %v824, %v943
      %v945 = vpop.f32.mrb[0].mxu0
      %946 = vmatprep.mubr.bf16.mxu0 0
      %947 = vmatmul.mubr.bf16.gmra.mrb[0].mxu0 %v863
      %v948 = vpop.f32.mrb[0].mxu0
      %v949 = vadd.f32 %v824, %v948
      %v950 = vpop.f32.mrb[0].mxu0
      %v951 = vpop.f32.mrb[0].mxu0
      %v952 = vadd.f32 %v824, %v951
      %v953 = vpop.f32.mrb[0].mxu0
      %954 = vmatprep.mubr.bf16.mxu0 0
      %955 = vmatmul.mubr.bf16.gmra.mrb[0].mxu0 %v864
      %v956 = vpop.f32.mrb[0].mxu0
      %v957 = vadd.f32 %v824, %v956
      %v958 = vpop.f32.mrb[0].mxu0
      %v959 = vpop.f32.mrb[0].mxu0
      %v960 = vadd.f32 %v824, %v959
      %v961 = vpop.f32.mrb[0].mxu0
      %962 = vmatprep.mubr.bf16.mxu0 0
      %963 = vmatmul.mubr.bf16.gmra.mrb[0].mxu0 %v865
      %v964 = vpop.f32.mrb[0].mxu0
      %v965 = vadd.f32 %v824, %v964
      %v966 = vpop.f32.mrb[0].mxu0
      %v967 = vpop.f32.mrb[0].mxu0
      %v968 = vadd.f32 %v824, %v967
      %v969 = vpop.f32.mrb[0].mxu0
      %970 = vdwg.mxu0
      %v971 = vmax.f32 %v909, 0.0
      %v972 = vmax.f32 %v912, 0.0
      %v973 = vmax.f32 %v917, 0.0
      %v974 = vmax.f32 %v920, 0.0
      %v975 = vmax.f32 %v925, 0.0
      %v976 = vmax.f32 %v928, 0.0
      %v977 = vmax.f32 %v933, 0.0
      %v978 = vmax.f32 %v936, 0.0
      %v979 = vmax.f32 %v941, 0.0
      %v980 = vmax.f32 %v944, 0.0
      %v981 = vmax.f32 %v949, 0.0
      %v982 = vmax.f32 %v952, 0.0
      %v983 = vmax.f32 %v957, 0.0
      %v984 = vmax.f32 %v960, 0.0
      %v985 = vmax.f32 %v965, 0.0
      %v986 = vmax.f32 %v968, 0.0
      %p987 = scmp.eq.s32.totalorder %s23, 0
      // Predicated region
      $region65: #{_forward_impl.1} parent=51 // pred_check
        %p988 = pneg %p987
      $region66: #{_forward_impl.1} parent=51 // pred_check_branch
        %990 = sbr.rel (%p988) target = $region68
      $region67: #{_forward_impl.1} parent=51 // pred_region
        %s991 = scalar_lea.vmem [#allocation4], %s356
        %992 = vst [vmem:[%s991] sm:$0xff] %v971
        %993 = vst [vmem:[%s991 + $0x8] sm:$0xff] %v972
        %994 = vst [vmem:[%s991 + $0x10] sm:$0xff] %v973
        %995 = vst [vmem:[%s991 + $0x18] sm:$0xff] %v974
        %996 = vst [vmem:[%s991 + $0x20] sm:$0xff] %v975
        %997 = vst [vmem:[%s991 + $0x28] sm:$0xff] %v976
        %998 = vst [vmem:[%s991 + $0x30] sm:$0xff] %v977
        %999 = vst [vmem:[%s991 + $0x38] sm:$0xff] %v978
        %1000 = vst [vmem:[%s991 + $0x40] sm:$0xff] %v979
        %1001 = vst [vmem:[%s991 + $0x48] sm:$0xff] %v980
        %1002 = vst [vmem:[%s991 + $0x50] sm:$0xff] %v981
        %1003 = vst [vmem:[%s991 + $0x58] sm:$0xff] %v982
        %1004 = vst [vmem:[%s991 + $0x60] sm:$0xff] %v983
        %1005 = vst [vmem:[%s991 + $0x68] sm:$0xff] %v984
        %1006 = vst [vmem:[%s991 + $0x70] sm:$0xff] %v985
        %1007 = vst [vmem:[%s991 + $0x78] sm:$0xff] %v986
      $region68: #{_forward_impl.1} parent=51 // pred_fallthru
        _
      %p1008 = scmp.gt.s32.totalorder %s23, 0
      // Predicated region
      $region69: #{_forward_impl.1} parent=51 // pred_check
        %p1009 = pneg %p1008
      $region70: #{_forward_impl.1} parent=51 // pred_check_branch
        %1011 = sbr.rel (%p1009) target = $region72
      $region71: #{_forward_impl.1} parent=51 // pred_region
        %s1012 = scalar_lea.vmem [#allocation4], %s356
        %v1013 = vld [vmem:[%s1012] sm:$0xff]
        %v1014 = vld [vmem:[%s1012 + $0x8] sm:$0xff]
        %v1015 = vld [vmem:[%s1012 + $0x10] sm:$0xff]
        %v1016 = vld [vmem:[%s1012 + $0x18] sm:$0xff]
        %v1017 = vld [vmem:[%s1012 + $0x20] sm:$0xff]
        %v1018 = vld [vmem:[%s1012 + $0x28] sm:$0xff]
        %v1019 = vld [vmem:[%s1012 + $0x30] sm:$0xff]
        %v1020 = vld [vmem:[%s1012 + $0x38] sm:$0xff]
        %v1021 = vld [vmem:[%s1012 + $0x40] sm:$0xff]
        %v1022 = vld [vmem:[%s1012 + $0x48] sm:$0xff]
        %v1023 = vld [vmem:[%s1012 + $0x50] sm:$0xff]
        %v1024 = vld [vmem:[%s1012 + $0x58] sm:$0xff]
        %v1025 = vld [vmem:[%s1012 + $0x60] sm:$0xff]
        %v1026 = vld [vmem:[%s1012 + $0x68] sm:$0xff]
        %v1027 = vld [vmem:[%s1012 + $0x70] sm:$0xff]
        %v1028 = vld [vmem:[%s1012 + $0x78] sm:$0xff]
        %v1029 = vmax.f32 %v1013, %v971
        %v1030 = vmax.f32 %v1014, %v972
        %v1031 = vmax.f32 %v1015, %v973
        %v1032 = vmax.f32 %v1016, %v974
        %v1033 = vmax.f32 %v1017, %v975
        %v1034 = vmax.f32 %v1018, %v976
        %v1035 = vmax.f32 %v1019, %v977
        %v1036 = vmax.f32 %v1020, %v978
        %v1037 = vmax.f32 %v1021, %v979
        %v1038 = vmax.f32 %v1022, %v980
        %v1039 = vmax.f32 %v1023, %v981
        %v1040 = vmax.f32 %v1024, %v982
        %v1041 = vmax.f32 %v1025, %v983
        %v1042 = vmax.f32 %v1026, %v984
        %v1043 = vmax.f32 %v1027, %v985
        %v1044 = vmax.f32 %v1028, %v986
        %1045 = vst [vmem:[%s1012] sm:$0xff] %v1029
        %1046 = vst [vmem:[%s1012 + $0x8] sm:$0xff] %v1030
        %1047 = vst [vmem:[%s1012 + $0x10] sm:$0xff] %v1031
        %1048 = vst [vmem:[%s1012 + $0x18] sm:$0xff] %v1032
        %1049 = vst [vmem:[%s1012 + $0x20] sm:$0xff] %v1033
        %1050 = vst [vmem:[%s1012 + $0x28] sm:$0xff] %v1034
        %1051 = vst [vmem:[%s1012 + $0x30] sm:$0xff] %v1035
        %1052 = vst [vmem:[%s1012 + $0x38] sm:$0xff] %v1036
        %1053 = vst [vmem:[%s1012 + $0x40] sm:$0xff] %v1037
        %1054 = vst [vmem:[%s1012 + $0x48] sm:$0xff] %v1038
        %1055 = vst [vmem:[%s1012 + $0x50] sm:$0xff] %v1039
        %1056 = vst [vmem:[%s1012 + $0x58] sm:$0xff] %v1040
        %1057 = vst [vmem:[%s1012 + $0x60] sm:$0xff] %v1041
        %1058 = vst [vmem:[%s1012 + $0x68] sm:$0xff] %v1042
        %1059 = vst [vmem:[%s1012 + $0x70] sm:$0xff] %v1043
        %1060 = vst [vmem:[%s1012 + $0x78] sm:$0xff] %v1044
      $region72: #{_forward_impl.1} parent=51 // pred_fallthru
        _
      %p1061 = scmp.lt.s32.totalorder %s23, 2
      // Predicated region
      $region73: #{_forward_impl.1} parent=51 // pred_check
        %p1062 = pneg %p1061
      $region74: #{_forward_impl.1} parent=51 // pred_check_branch
        %1064 = sbr.rel (%p1062) target = $region76
      $region75: #{_forward_impl.1} parent=51 // pred_region
        %v1065 = vpack.c.bf16 %v972, %v971
        %v1066 = vpack.c.bf16 %v974, %v973
        %v1067 = vpack.c.bf16 %v976, %v975
        %v1068 = vpack.c.bf16 %v978, %v977
        %v1069 = vpack.c.bf16 %v980, %v979
        %v1070 = vpack.c.bf16 %v982, %v981
        %v1071 = vpack.c.bf16 %v984, %v983
        %v1072 = vpack.c.bf16 %v986, %v985
        %s1073 = sshra.s32 %s356, 4
        %s1074 = sand.u32 %s356, 15
        %s1075 = smul.addr %s1073, 8
        %s1076 = scalar_lea.vmem [#allocation3], %s1075
        %1077 = vst [vmem:[%s1076] sm:$0xff] %v1065
        %1078 = vst [vmem:[%s1076 + $0x8] sm:$0xff] %v1066
        %1079 = vst [vmem:[%s1076 + $0x10] sm:$0xff] %v1067
        %1080 = vst [vmem:[%s1076 + $0x18] sm:$0xff] %v1068
        %1081 = vst [vmem:[%s1076 + $0x20] sm:$0xff] %v1069
        %1082 = vst [vmem:[%s1076 + $0x28] sm:$0xff] %v1070
        %1083 = vst [vmem:[%s1076 + $0x30] sm:$0xff] %v1071
        %1084 = vst [vmem:[%s1076 + $0x38] sm:$0xff] %v1072
      $region76: #{_forward_impl.1} parent=51 // pred_fallthru
        _
      %p1085 = scmp.eq.s32.totalorder %s23, 2
      // Predicated region
      $region77: #{_forward_impl.1} parent=51 // pred_check
        %p1086 = pneg %p1085
      $region78: #{_forward_impl.1} parent=51 // pred_check_branch
        %1088 = sbr.rel (%p1086) target = $region80
      $region79: #{_forward_impl.1} parent=51 // pred_region
        %s1089 = scalar_lea.vmem [#allocation4], %s356
        %v1090 = vld [vmem:[%s1089] sm:$0xff]
        %v1091 = vld [vmem:[%s1089 + $0x8] sm:$0xff]
        %v1092 = vld [vmem:[%s1089 + $0x10] sm:$0xff]
        %v1093 = vld [vmem:[%s1089 + $0x18] sm:$0xff]
        %v1094 = vld [vmem:[%s1089 + $0x20] sm:$0xff]
        %v1095 = vld [vmem:[%s1089 + $0x28] sm:$0xff]
        %v1096 = vld [vmem:[%s1089 + $0x30] sm:$0xff]
        %v1097 = vld [vmem:[%s1089 + $0x38] sm:$0xff]
        %v1098 = vld [vmem:[%s1089 + $0x40] sm:$0xff]
        %v1099 = vld [vmem:[%s1089 + $0x48] sm:$0xff]
        %v1100 = vld [vmem:[%s1089 + $0x50] sm:$0xff]
        %v1101 = vld [vmem:[%s1089 + $0x58] sm:$0xff]
        %v1102 = vld [vmem:[%s1089 + $0x60] sm:$0xff]
        %v1103 = vld [vmem:[%s1089 + $0x68] sm:$0xff]
        %v1104 = vld [vmem:[%s1089 + $0x70] sm:$0xff]
        %v1105 = vld [vmem:[%s1089 + $0x78] sm:$0xff]
        %v1106 = vpack.c.bf16 %v1091, %v1090
        %v1107 = vpack.c.bf16 %v1093, %v1092
        %v1108 = vpack.c.bf16 %v1095, %v1094
        %v1109 = vpack.c.bf16 %v1097, %v1096
        %v1110 = vpack.c.bf16 %v1099, %v1098
        %v1111 = vpack.c.bf16 %v1101, %v1100
        %v1112 = vpack.c.bf16 %v1103, %v1102
        %v1113 = vpack.c.bf16 %v1105, %v1104
        %v1114 = vld [vmem:[%s4] sm:$0xf]
        %v1115 = vld [vmem:[%s4 + $0x4] sm:$0xf]
        %v1116 = vld [vmem:[%s4 + $0x8] sm:$0xf]
        %v1117 = vld [vmem:[%s4 + $0xc] sm:$0xf]
        %v1118 = vld [vmem:[%s4 + $0x10] sm:$0xf]
        %v1119 = vld [vmem:[%s4 + $0x14] sm:$0xf]
        %v1120 = vld [vmem:[%s4 + $0x18] sm:$0xf]
        %v1121 = vld [vmem:[%s4 + $0x1c] sm:$0xf]
        %v1122 = vld [vmem:[%s4 + $0x20] sm:$0xf]
        %v1123 = vld [vmem:[%s4 + $0x24] sm:$0xf]
        %v1124 = vld [vmem:[%s4 + $0x28] sm:$0xf]
        %v1125 = vld [vmem:[%s4 + $0x2c] sm:$0xf]
        %v1126 = vld [vmem:[%s4 + $0x30] sm:$0xf]
        %v1127 = vld [vmem:[%s4 + $0x34] sm:$0xf]
        %v1128 = vld [vmem:[%s4 + $0x38] sm:$0xf]
        %v1129 = vld [vmem:[%s4 + $0x3c] sm:$0xf]
        %v1130 = vld [vmem:[%s5] sm:$0x1]
        %v1132 = vlaneseq
        %v1133 = vshrl.u32 %v1132, 7
        %v1134 = vsub.s32 0, %v1133
        %v1135 = vrot.slane %v1130, %v1134
        %v1153 = vunpack.c.l.b16 %v1114
        %v1154 = vunpack.c.l.b16 %v1115
        %v1155 = vunpack.c.l.b16 %v1116
        %v1156 = vunpack.c.l.b16 %v1117
        %v1157 = vunpack.c.l.b16 %v1118
        %v1158 = vunpack.c.l.b16 %v1119
        %v1159 = vunpack.c.l.b16 %v1120
        %v1160 = vunpack.c.l.b16 %v1121
        %v1161 = vunpack.c.l.b16 %v1122
        %v1162 = vunpack.c.l.b16 %v1123
        %v1163 = vunpack.c.l.b16 %v1124
        %v1164 = vunpack.c.l.b16 %v1125
        %v1165 = vunpack.c.l.b16 %v1126
        %v1166 = vunpack.c.l.b16 %v1127
        %v1167 = vunpack.c.l.b16 %v1128
        %v1168 = vunpack.c.l.b16 %v1129
        %v1169 = vpack.c.b16 %v1154, %v1153
        %v1170 = vpack.c.b16 %v1156, %v1155
        %v1171 = vpack.c.b16 %v1158, %v1157
        %v1172 = vpack.c.b16 %v1160, %v1159
        %v1173 = vpack.c.b16 %v1162, %v1161
        %v1174 = vpack.c.b16 %v1164, %v1163
        %v1175 = vpack.c.b16 %v1166, %v1165
        %v1176 = vpack.c.b16 %v1168, %v1167
        %1185 = vmatprep.subr.bf16.mxu0 0
        %1186 = vmatpush1.bf16.msra.mxu0 %v1169
        %1187 = vmatprep.subr.bf16.mxu0 0
        %1188 = vmatpush1.bf16.msra.mxu0 %v1170
        %1189 = vmatprep.subr.bf16.mxu0 0
        %1190 = vmatpush1.bf16.msra.mxu0 %v1171
        %1191 = vmatprep.subr.bf16.mxu0 0
        %1192 = vmatpush1.bf16.msra.mxu0 %v1172
        %1193 = vmatprep.subr.bf16.mxu0 0
        %1194 = vmatpush1.bf16.msra.mxu0 %v1173
        %1195 = vmatprep.subr.bf16.mxu0 0
        %1196 = vmatpush1.bf16.msra.mxu0 %v1174
        %1197 = vmatprep.subr.bf16.mxu0 0
        %1198 = vmatpush1.bf16.msra.mxu0 %v1175
        %1199 = vmatprep.subr.bf16.mxu0 0
        %1200 = vmatpush1.bf16.msra.mxu0 %v1176
        %1201 = vmatprep.subr.bf16.mxu0 0
        %1202 = vmatpush1.bf16.msra.mxu0 0
        %1203 = vmatprep.subr.bf16.mxu0 0
        %1204 = vmatpush1.bf16.msra.mxu0 0
        %1205 = vmatprep.subr.bf16.mxu0 0
        %1206 = vmatpush1.bf16.msra.mxu0 0
        %1207 = vmatprep.subr.bf16.mxu0 0
        %1208 = vmatpush1.bf16.msra.mxu0 0
        %1209 = vmatprep.subr.bf16.mxu0 0
        %1210 = vmatpush1.bf16.msra.mxu0 0
        %1211 = vmatprep.subr.bf16.mxu0 0
        %1212 = vmatpush1.bf16.msra.mxu0 0
        %1213 = vmatprep.subr.bf16.mxu0 0
        %1214 = vmatpush1.bf16.msra.mxu0 0
        %1215 = vmatprep.subr.bf16.mxu0 0
        %1216 = vmatpush1.bf16.msra.mxu0 0
        %1217 = vmatprep.mubr.bf16.mxu0 0
        %1218 = vmatmul.mubr.bf16.gmra.mrb[0].mxu0 %v1106
        %v1219 = vpop.f32.mrb[0].mxu0
        %v1220 = vadd.f32 %v1135, %v1219
        %v1221 = vpop.f32.mrb[0].mxu0
        %v1222 = vpop.f32.mrb[0].mxu0
        %v1223 = vadd.f32 %v1135, %v1222
        %v1224 = vpop.f32.mrb[0].mxu0
        %1225 = vmatprep.mubr.bf16.mxu0 0
        %1226 = vmatmul.mubr.bf16.gmra.mrb[0].mxu0 %v1107
        %v1227 = vpop.f32.mrb[0].mxu0
        %v1228 = vadd.f32 %v1135, %v1227
        %v1229 = vpop.f32.mrb[0].mxu0
        %v1230 = vpop.f32.mrb[0].mxu0
        %v1231 = vadd.f32 %v1135, %v1230
        %v1232 = vpop.f32.mrb[0].mxu0
        %1233 = vmatprep.mubr.bf16.mxu0 0
        %1234 = vmatmul.mubr.bf16.gmra.mrb[0].mxu0 %v1108
        %v1235 = vpop.f32.mrb[0].mxu0
        %v1236 = vadd.f32 %v1135, %v1235
        %v1237 = vpop.f32.mrb[0].mxu0
        %v1238 = vpop.f32.mrb[0].mxu0
        %v1239 = vadd.f32 %v1135, %v1238
        %v1240 = vpop.f32.mrb[0].mxu0
        %1241 = vmatprep.mubr.bf16.mxu0 0
        %1242 = vmatmul.mubr.bf16.gmra.mrb[0].mxu0 %v1109
        %v1243 = vpop.f32.mrb[0].mxu0
        %v1244 = vadd.f32 %v1135, %v1243
        %v1245 = vpop.f32.mrb[0].mxu0
        %v1246 = vpop.f32.mrb[0].mxu0
        %v1247 = vadd.f32 %v1135, %v1246
        %v1248 = vpop.f32.mrb[0].mxu0
        %1249 = vmatprep.mubr.bf16.mxu0 0
        %1250 = vmatmul.mubr.bf16.gmra.mrb[0].mxu0 %v1110
        %v1251 = vpop.f32.mrb[0].mxu0
        %v1252 = vadd.f32 %v1135, %v1251
        %v1253 = vpop.f32.mrb[0].mxu0
        %v1254 = vpop.f32.mrb[0].mxu0
        %v1255 = vadd.f32 %v1135, %v1254
        %v1256 = vpop.f32.mrb[0].mxu0
        %1257 = vmatprep.mubr.bf16.mxu0 0
        %1258 = vmatmul.mubr.bf16.gmra.mrb[0].mxu0 %v1111
        %v1259 = vpop.f32.mrb[0].mxu0
        %v1260 = vadd.f32 %v1135, %v1259
        %v1261 = vpop.f32.mrb[0].mxu0
        %v1262 = vpop.f32.mrb[0].mxu0
        %v1263 = vadd.f32 %v1135, %v1262
        %v1264 = vpop.f32.mrb[0].mxu0
        %1265 = vmatprep.mubr.bf16.mxu0 0
        %1266 = vmatmul.mubr.bf16.gmra.mrb[0].mxu0 %v1112
        %v1267 = vpop.f32.mrb[0].mxu0
        %v1268 = vadd.f32 %v1135, %v1267
        %v1269 = vpop.f32.mrb[0].mxu0
        %v1270 = vpop.f32.mrb[0].mxu0
        %v1271 = vadd.f32 %v1135, %v1270
        %v1272 = vpop.f32.mrb[0].mxu0
        %1273 = vmatprep.mubr.bf16.mxu0 0
        %1274 = vmatmul.mubr.bf16.gmra.mrb[0].mxu0 %v1113
        %v1275 = vpop.f32.mrb[0].mxu0
        %v1276 = vadd.f32 %v1135, %v1275
        %v1277 = vpop.f32.mrb[0].mxu0
        %v1278 = vpop.f32.mrb[0].mxu0
        %v1279 = vadd.f32 %v1135, %v1278
        %v1280 = vpop.f32.mrb[0].mxu0
        %1281 = vdwg.mxu0
        %v1282 = vmax.f32 %v1220, 0.0
        %v1283 = vmax.f32 %v1223, 0.0
        %v1284 = vmax.f32 %v1228, 0.0
        %v1285 = vmax.f32 %v1231, 0.0
        %v1286 = vmax.f32 %v1236, 0.0
        %v1287 = vmax.f32 %v1239, 0.0
        %v1288 = vmax.f32 %v1244, 0.0
        %v1289 = vmax.f32 %v1247, 0.0
        %v1290 = vmax.f32 %v1252, 0.0
        %v1291 = vmax.f32 %v1255, 0.0
        %v1292 = vmax.f32 %v1260, 0.0
        %v1293 = vmax.f32 %v1263, 0.0
        %v1294 = vmax.f32 %v1268, 0.0
        %v1295 = vmax.f32 %v1271, 0.0
        %v1296 = vmax.f32 %v1276, 0.0
        %v1297 = vmax.f32 %v1279, 0.0
        %v1298 = vpack.c.bf16 %v1283, %v1282
        %v1299 = vpack.c.bf16 %v1285, %v1284
        %v1300 = vpack.c.bf16 %v1287, %v1286
        %v1301 = vpack.c.bf16 %v1289, %v1288
        %v1302 = vpack.c.bf16 %v1291, %v1290
        %v1303 = vpack.c.bf16 %v1293, %v1292
        %v1304 = vpack.c.bf16 %v1295, %v1294
        %v1305 = vpack.c.bf16 %v1297, %v1296
        %v1306 = vld [vmem:[%s6] sm:$0xf]
        %v1307 = vld [vmem:[%s6 + $0x4] sm:$0xf]
        %v1308 = vld [vmem:[%s6 + $0x8] sm:$0xf]
        %v1309 = vld [vmem:[%s6 + $0xc] sm:$0xf]
        %v1310 = vld [vmem:[%s6 + $0x10] sm:$0xf]
        %v1311 = vld [vmem:[%s6 + $0x14] sm:$0xf]
        %v1312 = vld [vmem:[%s6 + $0x18] sm:$0xf]
        %v1313 = vld [vmem:[%s6 + $0x1c] sm:$0xf]
        %v1314 = vld [vmem:[%s6 + $0x20] sm:$0xf]
        %v1315 = vld [vmem:[%s6 + $0x24] sm:$0xf]
        %v1316 = vld [vmem:[%s6 + $0x28] sm:$0xf]
        %v1317 = vld [vmem:[%s6 + $0x2c] sm:$0xf]
        %v1318 = vld [vmem:[%s6 + $0x30] sm:$0xf]
        %v1319 = vld [vmem:[%s6 + $0x34] sm:$0xf]
        %v1320 = vld [vmem:[%s6 + $0x38] sm:$0xf]
        %v1321 = vld [vmem:[%s6 + $0x3c] sm:$0xf]
        %v1322 = vld [vmem:[%s7] sm:$0x1]
        %v1324 = vlaneseq
        %v1325 = vshrl.u32 %v1324, 7
        %v1326 = vsub.s32 0, %v1325
        %v1327 = vrot.slane %v1322, %v1326
        %v1345 = vunpack.c.l.b16 %v1306
        %v1346 = vunpack.c.l.b16 %v1307
        %v1347 = vunpack.c.l.b16 %v1308
        %v1348 = vunpack.c.l.b16 %v1309
        %v1349 = vunpack.c.l.b16 %v1310
        %v1350 = vunpack.c.l.b16 %v1311
        %v1351 = vunpack.c.l.b16 %v1312
        %v1352 = vunpack.c.l.b16 %v1313
        %v1353 = vunpack.c.l.b16 %v1314
        %v1354 = vunpack.c.l.b16 %v1315
        %v1355 = vunpack.c.l.b16 %v1316
        %v1356 = vunpack.c.l.b16 %v1317
        %v1357 = vunpack.c.l.b16 %v1318
        %v1358 = vunpack.c.l.b16 %v1319
        %v1359 = vunpack.c.l.b16 %v1320
        %v1360 = vunpack.c.l.b16 %v1321
        %v1361 = vpack.c.b16 %v1346, %v1345
        %v1362 = vpack.c.b16 %v1348, %v1347
        %v1363 = vpack.c.b16 %v1350, %v1349
        %v1364 = vpack.c.b16 %v1352, %v1351
        %v1365 = vpack.c.b16 %v1354, %v1353
        %v1366 = vpack.c.b16 %v1356, %v1355
        %v1367 = vpack.c.b16 %v1358, %v1357
        %v1368 = vpack.c.b16 %v1360, %v1359
        %1377 = vmatprep.subr.bf16.mxu0 0
        %1378 = vmatpush1.bf16.msra.mxu0 %v1361
        %1379 = vmatprep.subr.bf16.mxu0 0
        %1380 = vmatpush1.bf16.msra.mxu0 %v1362
        %1381 = vmatprep.subr.bf16.mxu0 0
        %1382 = vmatpush1.bf16.msra.mxu0 %v1363
        %1383 = vmatprep.subr.bf16.mxu0 0
        %1384 = vmatpush1.bf16.msra.mxu0 %v1364
        %1385 = vmatprep.subr.bf16.mxu0 0
        %1386 = vmatpush1.bf16.msra.mxu0 %v1365
        %1387 = vmatprep.subr.bf16.mxu0 0
        %1388 = vmatpush1.bf16.msra.mxu0 %v1366
        %1389 = vmatprep.subr.bf16.mxu0 0
        %1390 = vmatpush1.bf16.msra.mxu0 %v1367
        %1391 = vmatprep.subr.bf16.mxu0 0
        %1392 = vmatpush1.bf16.msra.mxu0 %v1368
        %1393 = vmatprep.subr.bf16.mxu0 0
        %1394 = vmatpush1.bf16.msra.mxu0 0
        %1395 = vmatprep.subr.bf16.mxu0 0
        %1396 = vmatpush1.bf16.msra.mxu0 0
        %1397 = vmatprep.subr.bf16.mxu0 0
        %1398 = vmatpush1.bf16.msra.mxu0 0
        %1399 = vmatprep.subr.bf16.mxu0 0
        %1400 = vmatpush1.bf16.msra.mxu0 0
        %1401 = vmatprep.subr.bf16.mxu0 0
        %1402 = vmatpush1.bf16.msra.mxu0 0
        %1403 = vmatprep.subr.bf16.mxu0 0
        %1404 = vmatpush1.bf16.msra.mxu0 0
        %1405 = vmatprep.subr.bf16.mxu0 0
        %1406 = vmatpush1.bf16.msra.mxu0 0
        %1407 = vmatprep.subr.bf16.mxu0 0
        %1408 = vmatpush1.bf16.msra.mxu0 0
        %1409 = vmatprep.mubr.bf16.mxu0 0
        %1410 = vmatmul.mubr.bf16.gmra.mrb[0].mxu0 %v1298
        %v1411 = vpop.f32.mrb[0].mxu0
        %v1412 = vadd.f32 %v1327, %v1411
        %v1413 = vpop.f32.mrb[0].mxu0
        %v1414 = vpop.f32.mrb[0].mxu0
        %v1415 = vadd.f32 %v1327, %v1414
        %v1416 = vpop.f32.mrb[0].mxu0
        %1417 = vmatprep.mubr.bf16.mxu0 0
        %1418 = vmatmul.mubr.bf16.gmra.mrb[0].mxu0 %v1299
        %v1419 = vpop.f32.mrb[0].mxu0
        %v1420 = vadd.f32 %v1327, %v1419
        %v1421 = vpop.f32.mrb[0].mxu0
        %v1422 = vpop.f32.mrb[0].mxu0
        %v1423 = vadd.f32 %v1327, %v1422
        %v1424 = vpop.f32.mrb[0].mxu0
        %1425 = vmatprep.mubr.bf16.mxu0 0
        %1426 = vmatmul.mubr.bf16.gmra.mrb[0].mxu0 %v1300
        %v1427 = vpop.f32.mrb[0].mxu0
        %v1428 = vadd.f32 %v1327, %v1427
        %v1429 = vpop.f32.mrb[0].mxu0
        %v1430 = vpop.f32.mrb[0].mxu0
        %v1431 = vadd.f32 %v1327, %v1430
        %v1432 = vpop.f32.mrb[0].mxu0
        %1433 = vmatprep.mubr.bf16.mxu0 0
        %1434 = vmatmul.mubr.bf16.gmra.mrb[0].mxu0 %v1301
        %v1435 = vpop.f32.mrb[0].mxu0
        %v1436 = vadd.f32 %v1327, %v1435
        %v1437 = vpop.f32.mrb[0].mxu0
        %v1438 = vpop.f32.mrb[0].mxu0
        %v1439 = vadd.f32 %v1327, %v1438
        %v1440 = vpop.f32.mrb[0].mxu0
        %1441 = vmatprep.mubr.bf16.mxu0 0
        %1442 = vmatmul.mubr.bf16.gmra.mrb[0].mxu0 %v1302
        %v1443 = vpop.f32.mrb[0].mxu0
        %v1444 = vadd.f32 %v1327, %v1443
        %v1445 = vpop.f32.mrb[0].mxu0
        %v1446 = vpop.f32.mrb[0].mxu0
        %v1447 = vadd.f32 %v1327, %v1446
        %v1448 = vpop.f32.mrb[0].mxu0
        %1449 = vmatprep.mubr.bf16.mxu0 0
        %1450 = vmatmul.mubr.bf16.gmra.mrb[0].mxu0 %v1303
        %v1451 = vpop.f32.mrb[0].mxu0
        %v1452 = vadd.f32 %v1327, %v1451
        %v1453 = vpop.f32.mrb[0].mxu0
        %v1454 = vpop.f32.mrb[0].mxu0
        %v1455 = vadd.f32 %v1327, %v1454
        %v1456 = vpop.f32.mrb[0].mxu0
        %1457 = vmatprep.mubr.bf16.mxu0 0
        %1458 = vmatmul.mubr.bf16.gmra.mrb[0].mxu0 %v1304
        %v1459 = vpop.f32.mrb[0].mxu0
        %v1460 = vadd.f32 %v1327, %v1459
        %v1461 = vpop.f32.mrb[0].mxu0
        %v1462 = vpop.f32.mrb[0].mxu0
        %v1463 = vadd.f32 %v1327, %v1462
        %v1464 = vpop.f32.mrb[0].mxu0
        %1465 = vmatprep.mubr.bf16.mxu0 0
        %1466 = vmatmul.mubr.bf16.gmra.mrb[0].mxu0 %v1305
        %v1467 = vpop.f32.mrb[0].mxu0
        %v1468 = vadd.f32 %v1327, %v1467
        %v1469 = vpop.f32.mrb[0].mxu0
        %v1470 = vpop.f32.mrb[0].mxu0
        %v1471 = vadd.f32 %v1327, %v1470
        %v1472 = vpop.f32.mrb[0].mxu0
        %1473 = vdwg.mxu0
        %1474 = vmax.xlane.f32.xlu0 %v1412
        %v1475 = vpop.xlane.xlu0 %1474
        %1476 = vmax.xlane.f32.xlu0 %v1415
        %v1477 = vpop.xlane.xlu0 %1476
        %1478 = vmax.xlane.f32.xlu0 %v1420
        %v1479 = vpop.xlane.xlu0 %1478
        %1480 = vmax.xlane.f32.xlu0 %v1423
        %v1481 = vpop.xlane.xlu0 %1480
        %1482 = vmax.xlane.f32.xlu0 %v1428
        %v1483 = vpop.xlane.xlu0 %1482
        %1484 = vmax.xlane.f32.xlu0 %v1431
        %v1485 = vpop.xlane.xlu0 %1484
        %1486 = vmax.xlane.f32.xlu0 %v1436
        %v1487 = vpop.xlane.xlu0 %1486
        %1488 = vmax.xlane.f32.xlu0 %v1439
        %v1489 = vpop.xlane.xlu0 %1488
        %1490 = vmax.xlane.f32.xlu0 %v1444
        %v1491 = vpop.xlane.xlu0 %1490
        %1492 = vmax.xlane.f32.xlu0 %v1447
        %v1493 = vpop.xlane.xlu0 %1492
        %1494 = vmax.xlane.f32.xlu0 %v1452
        %v1495 = vpop.xlane.xlu0 %1494
        %1496 = vmax.xlane.f32.xlu0 %v1455
        %v1497 = vpop.xlane.xlu0 %1496
        %1498 = vmax.xlane.f32.xlu0 %v1460
        %v1499 = vpop.xlane.xlu0 %1498
        %1500 = vmax.xlane.f32.xlu0 %v1463
        %v1501 = vpop.xlane.xlu0 %1500
        %1502 = vmax.xlane.f32.xlu0 %v1468
        %v1503 = vpop.xlane.xlu0 %1502
        %1504 = vmax.xlane.f32.xlu0 %v1471
        %v1505 = vpop.xlane.xlu0 %1504
        %v1506 = vsub.f32 %v1412, %v1475
        %v1507 = vsub.f32 %v1415, %v1477
        %v1508 = vsub.f32 %v1420, %v1479
        %v1509 = vsub.f32 %v1423, %v1481
        %v1510 = vsub.f32 %v1428, %v1483
        %v1511 = vsub.f32 %v1431, %v1485
        %v1512 = vsub.f32 %v1436, %v1487
        %v1513 = vsub.f32 %v1439, %v1489
        %v1514 = vsub.f32 %v1444, %v1491
        %v1515 = vsub.f32 %v1447, %v1493
        %v1516 = vsub.f32 %v1452, %v1495
        %v1517 = vsub.f32 %v1455, %v1497
        %v1518 = vsub.f32 %v1460, %v1499
        %v1519 = vsub.f32 %v1463, %v1501
        %v1520 = vsub.f32 %v1468, %v1503
        %v1521 = vsub.f32 %v1471, %v1505
        %v1522 = vmul.f32 %v1506, 1.442695
        %v1523 = vpow.pop %v1522
        %v1524 = vmul.f32 %v1507, 1.442695
        %v1525 = vpow.pop %v1524
        %v1526 = vmul.f32 %v1508, 1.442695
        %v1527 = vpow.pop %v1526
        %v1528 = vmul.f32 %v1509, 1.442695
        %v1529 = vpow.pop %v1528
        %v1530 = vmul.f32 %v1510, 1.442695
        %v1531 = vpow.pop %v1530
        %v1532 = vmul.f32 %v1511, 1.442695
        %v1533 = vpow.pop %v1532
        %v1534 = vmul.f32 %v1512, 1.442695
        %v1535 = vpow.pop %v1534
        %v1536 = vmul.f32 %v1513, 1.442695
        %v1537 = vpow.pop %v1536
        %v1538 = vmul.f32 %v1514, 1.442695
        %v1539 = vpow.pop %v1538
        %v1540 = vmul.f32 %v1515, 1.442695
        %v1541 = vpow.pop %v1540
        %v1542 = vmul.f32 %v1516, 1.442695
        %v1543 = vpow.pop %v1542
        %v1544 = vmul.f32 %v1517, 1.442695
        %v1545 = vpow.pop %v1544
        %v1546 = vmul.f32 %v1518, 1.442695
        %v1547 = vpow.pop %v1546
        %v1548 = vmul.f32 %v1519, 1.442695
        %v1549 = vpow.pop %v1548
        %v1550 = vmul.f32 %v1520, 1.442695
        %v1551 = vpow.pop %v1550
        %v1552 = vmul.f32 %v1521, 1.442695
        %v1553 = vpow.pop %v1552
        %1554 = vadd.xlane.f32.xlu0 %v1523
        %v1555 = vpop.xlane.xlu0 %1554
        %1556 = vadd.xlane.f32.xlu0 %v1525
        %v1557 = vpop.xlane.xlu0 %1556
        %1558 = vadd.xlane.f32.xlu0 %v1527
        %v1559 = vpop.xlane.xlu0 %1558
        %1560 = vadd.xlane.f32.xlu0 %v1529
        %v1561 = vpop.xlane.xlu0 %1560
        %1562 = vadd.xlane.f32.xlu0 %v1531
        %v1563 = vpop.xlane.xlu0 %1562
        %1564 = vadd.xlane.f32.xlu0 %v1533
        %v1565 = vpop.xlane.xlu0 %1564
        %1566 = vadd.xlane.f32.xlu0 %v1535
        %v1567 = vpop.xlane.xlu0 %1566
        %1568 = vadd.xlane.f32.xlu0 %v1537
        %v1569 = vpop.xlane.xlu0 %1568
        %1570 = vadd.xlane.f32.xlu0 %v1539
        %v1571 = vpop.xlane.xlu0 %1570
        %1572 = vadd.xlane.f32.xlu0 %v1541
        %v1573 = vpop.xlane.xlu0 %1572
        %1574 = vadd.xlane.f32.xlu0 %v1543
        %v1575 = vpop.xlane.xlu0 %1574
        %1576 = vadd.xlane.f32.xlu0 %v1545
        %v1577 = vpop.xlane.xlu0 %1576
        %1578 = vadd.xlane.f32.xlu0 %v1547
        %v1579 = vpop.xlane.xlu0 %1578
        %1580 = vadd.xlane.f32.xlu0 %v1549
        %v1581 = vpop.xlane.xlu0 %1580
        %1582 = vadd.xlane.f32.xlu0 %v1551
        %v1583 = vpop.xlane.xlu0 %1582
        %1584 = vadd.xlane.f32.xlu0 %v1553
        %v1585 = vpop.xlane.xlu0 %1584
        %v1586 = vlog2.pop %v1555
        %v1587 = vmul.f32 %v1586, 0.6931472
        %v1588 = vlog2.pop %v1557
        %v1589 = vmul.f32 %v1588, 0.6931472
        %v1590 = vlog2.pop %v1559
        %v1591 = vmul.f32 %v1590, 0.6931472
        %v1592 = vlog2.pop %v1561
        %v1593 = vmul.f32 %v1592, 0.6931472
        %v1594 = vlog2.pop %v1563
        %v1595 = vmul.f32 %v1594, 0.6931472
        %v1596 = vlog2.pop %v1565
        %v1597 = vmul.f32 %v1596, 0.6931472
        %v1598 = vlog2.pop %v1567
        %v1599 = vmul.f32 %v1598, 0.6931472
        %v1600 = vlog2.pop %v1569
        %v1601 = vmul.f32 %v1600, 0.6931472
        %v1602 = vlog2.pop %v1571
        %v1603 = vmul.f32 %v1602, 0.6931472
        %v1604 = vlog2.pop %v1573
        %v1605 = vmul.f32 %v1604, 0.6931472
        %v1606 = vlog2.pop %v1575
        %v1607 = vmul.f32 %v1606, 0.6931472
        %v1608 = vlog2.pop %v1577
        %v1609 = vmul.f32 %v1608, 0.6931472
        %v1610 = vlog2.pop %v1579
        %v1611 = vmul.f32 %v1610, 0.6931472
        %v1612 = vlog2.pop %v1581
        %v1613 = vmul.f32 %v1612, 0.6931472
        %v1614 = vlog2.pop %v1583
        %v1615 = vmul.f32 %v1614, 0.6931472
        %v1616 = vlog2.pop %v1585
        %v1617 = vmul.f32 %v1616, 0.6931472
        %v1618 = vsub.f32 %v1506, %v1587
        %v1619 = vsub.f32 %v1507, %v1589
        %v1620 = vsub.f32 %v1508, %v1591
        %v1621 = vsub.f32 %v1509, %v1593
        %v1622 = vsub.f32 %v1510, %v1595
        %v1623 = vsub.f32 %v1511, %v1597
        %v1624 = vsub.f32 %v1512, %v1599
        %v1625 = vsub.f32 %v1513, %v1601
        %v1626 = vsub.f32 %v1514, %v1603
        %v1627 = vsub.f32 %v1515, %v1605
        %v1628 = vsub.f32 %v1516, %v1607
        %v1629 = vsub.f32 %v1517, %v1609
        %v1630 = vsub.f32 %v1518, %v1611
        %v1631 = vsub.f32 %v1519, %v1613
        %v1632 = vsub.f32 %v1520, %v1615
        %v1633 = vsub.f32 %v1521, %v1617
        %1634 = vst [vmem:[%s353] sm:$0xff] %v1618
        %1635 = vst [vmem:[%s353 + $0x8] sm:$0xff] %v1619
        %1636 = vst [vmem:[%s353 + $0x10] sm:$0xff] %v1620
        %1637 = vst [vmem:[%s353 + $0x18] sm:$0xff] %v1621
        %1638 = vst [vmem:[%s353 + $0x20] sm:$0xff] %v1622
        %1639 = vst [vmem:[%s353 + $0x28] sm:$0xff] %v1623
        %1640 = vst [vmem:[%s353 + $0x30] sm:$0xff] %v1624
        %1641 = vst [vmem:[%s353 + $0x38] sm:$0xff] %v1625
        %1642 = vst [vmem:[%s353 + $0x40] sm:$0xff] %v1626
        %1643 = vst [vmem:[%s353 + $0x48] sm:$0xff] %v1627
        %1644 = vst [vmem:[%s353 + $0x50] sm:$0xff] %v1628
        %1645 = vst [vmem:[%s353 + $0x58] sm:$0xff] %v1629
        %1646 = vst [vmem:[%s353 + $0x60] sm:$0xff] %v1630
        %1647 = vst [vmem:[%s353 + $0x68] sm:$0xff] %v1631
        %1648 = vst [vmem:[%s353 + $0x70] sm:$0xff] %v1632
        %1649 = vst [vmem:[%s353 + $0x78] sm:$0xff] %v1633
      $region80: #{_forward_impl.1} parent=51 // pred_fallthru
        _
      %s1650 = smul.u32 16, %s24
      %p1651 = scmp.lt.s32.totalorder %s1650, 15
      %s1652 = scalar_select %p1651, %s1650, 15
      %s1653 = smul.addr %s1652, 8
      %s1654 = scalar_lea.vmem %s8, %s1653
      // Predicated region
      $region81: #{_forward_impl.1} parent=51 // pred_check
        %p1655 = pneg %p232
      $region82: #{_forward_impl.1} parent=51 // pred_check_branch
        %1657 = sbr.rel (%p1655) target = $region84
      $region83: #{_forward_impl.1} parent=51 // pred_region
        %s1658 = smul.u32 16, %s24
      $region84: #{_forward_impl.1} parent=51 // pred_fallthru
        _
      // Predicated region
      $region85: #{_forward_impl.1} parent=51 // pred_check
        %p1659 = pneg %p232
      $region86: #{_forward_impl.1} parent=51 // pred_check_branch
        %1661 = sbr.rel (%p1659) target = $region88
      $region87: #{_forward_impl.1} parent=51 // pred_region
        %s1662 = smul.u32 16, %s24
        %p1663 = scmp.lt.s32.totalorder %s1662, 15
        %s1664 = scalar_select %p1663, %s1662, 15
        %s1665 = smul.addr %s1664, 8
        %s1666 = scalar_lea.vmem %s8, %s1665
      $region88: #{_forward_impl.1} parent=51 // pred_fallthru
        _
    $region52: #{_forward_impl.1} parent=5 // pred_fallthru
      _
    %p1667 = scmp.le.s32.totalorder 2, %s14
    // Predicated region
    $region89: #{_forward_impl.1} parent=5 // pred_check
      %p1668 = pneg %p1667
    $region90: #{_forward_impl.1} parent=5 // pred_check_branch
      %1670 = sbr.rel (%p1668) target = $region92
    $region91: #{_forward_impl.1} parent=5 // pred_region
      %s1671 = ssub.s32 %s14, 2
    $region92: #{_forward_impl.1} parent=5 // pred_fallthru
      _
  $region6: #{_forward_impl.1} parent=0 // loop_footer
    %s18 = sadd.s32 1, %s14
  $region7: #{_forward_impl.1} parent=0 // loop_footer_branch
    %13 = sbr.rel target = $region3
  $region8: #{_forward_impl.1} parent=0 // loop_exit
    _

</llo_original>
